<compile_context>
chip_gen: v7x
topology: tpu7x:2x2x1
jax: 0.10.0
libtpu: 0.0.40
codegen_flags: <defaults>
</compile_context>

<pallas_src>
import functools

import jax
import jax.numpy as jnp
from jax import lax
from jax.experimental import pallas as pl
from jax.experimental.pallas import tpu as pltpu

EMBEDDING_SIZE = 64
HIDDEN_SIZE = 64
ITEM_NUM = 1090
INPUT_SIZE = EMBEDDING_SIZE + 2          # time + emb + value = 66
MATMUL_DTYPE = jnp.bfloat16              # MXU-native on v5e/v6e/v7x
MAX_TIME_TILE = 128                      # upper bound on timesteps per tile
MAX_BATCH_BLOCK = 128                    # padded batch rows per grid block
VMEM_BUDGET_BYTES = 8 * 1024 * 1024      # safe under v5e 16MiB scoped default


def _round_up(v, m):
    return (v + m - 1) // m * m


def _choose_time_tile(seq_len, batch_block):
    """Pick a time tile that (a) fits the VMEM budget at this batch block and
    (b) minimizes padded (wasted) timesteps for awkward sequence lengths."""
    # Per (TT*BB) row: f32 gx scratch (3H*4 B) + double-buffered bf16 x (2*F*2 B).
    bytes_per_row = 3 * HIDDEN_SIZE * 4 + 2 * INPUT_SIZE * 2
    max_rows = max(8, VMEM_BUDGET_BYTES // bytes_per_row)
    tt_cap = min(MAX_TIME_TILE, max(8, max_rows // batch_block))
    tt_cap = max(8, (tt_cap // 8) * 8)                       # multiple of 8
    n_blk = -(-seq_len // tt_cap)                            # ceil
    tt = _round_up(-(-seq_len // n_blk), 8)                  # even split, 8-aligned
    return min(tt, tt_cap), n_blk


def _gru_fc_kernel(x_ref,        # (TT*BB, F)   bf16   current time tile
                   wih_ref,      # (F, 3H)      bf16   [W_ir^T | W_iz^T | W_in^T]
                   whh_ref,      # (H, 3H)      bf16   [W_hr^T | W_hz^T | W_hn^T]
                   bx_ref,       # (1, 3H)      f32    [b_ir+b_hr | b_iz+b_hz | b_in]
                   bhn_ref,      # (1, H)       f32    b_hn
                   wfc_ref,      # (1, H)       f32
                   bfc_ref,      # (1, 1)       f32
                   out_ref,      # (BB, 1)      f32
                   h_scratch,    # (BB, H)      f32  VMEM, persists across time
                   gx_scratch,   # (TT*BB, 3H)  f32  VMEM
                   *, tile_t, batch_block, seq_len, mask_tail, skip_dead_tiles):
    H = h_scratch.shape[1]
    BB = batch_block
    t_blk = pl.program_id(1)

    # h_0 = 0 (PyTorch GRU default); reset per batch block at the first tile.
    @pl.when(t_blk == 0)
    def _():
        h_scratch[...] = jnp.zeros_like(h_scratch)

    def tile_body():
        # Hoisted input projection for the whole tile: one MXU matmul
        # (TT*BB, 66) @ (66, 192), f32 accumulation, fused r/z biases added once.
        gx_scratch[...] = (
            jnp.dot(x_ref[...], wih_ref[...], preferred_element_type=jnp.float32)
            + bx_ref[...])

        whh = whh_ref[...]                                   # (H, 3H) bf16
        b_hn = jnp.broadcast_to(bhn_ref[...], (BB, H))       # hoisted broadcast

        # TODO(synk): pin W_hh in the MXU across the tile via explicit MXU
        # driving (pltpu.matmul_push_rhs / matmul_acc_lhs / matmul_pop) and on
        # v7x accumulate h@W_hh on top of gx in the MRB; kept as jnp.dot here
        # for portable lowering across chip generations.
        def step(t, h):                                      # h: (BB, H) f32 carry
            row = pl.multiple_of(t * BB, 8)
            gx_t = gx_scratch[pl.ds(row, BB), :]             # (BB, 3H) f32
            gh = jnp.dot(h.astype(whh.dtype), whh,
                         preferred_element_type=jnp.float32)  # (BB, 3H) f32
            rz = jax.nn.sigmoid(gx_t[:, :2 * H] + gh[:, :2 * H])
            z = rz[:, H:]
            n = jnp.tanh(gx_t[:, 2 * H:] + rz[:, :H] * (gh[:, 2 * H:] + b_hn))
            h_new = n + z * (h - n)          # == (1-z)*n + z*h, fewer VPU ops
            if mask_tail:
                # Freeze h on zero-padded timesteps past the true sequence end.
                h_new = jnp.where(t_blk * tile_t + t < seq_len, h_new, h)
            return h_new

        h_scratch[...] = lax.fori_loop(0, tile_t, step, h_scratch[...],
                                       unroll=min(tile_t, 16))

    if skip_dead_tiles:
        # Fully-padded tail tiles do no MXU / EUP work at all.
        pl.when(t_blk * tile_t < seq_len)(tile_body)
    else:
        tile_body()

    @pl.when(t_blk == pl.num_programs(1) - 1)
    def _():
        # Linear(64 -> 1) as VPU multiply + lane reduction, then sigmoid.
        h_last = h_scratch[...]
        logits = (jnp.sum(h_last * wfc_ref[...], axis=-1, keepdims=True)
                  + bfc_ref[...])
        out_ref[...] = jax.nn.sigmoid(logits)


def _gru_fc_pallas(x2d, wih, whh, bx, bhn, wfc, bfc, *,
                   seq_len, tile_t, n_time_blocks, batch_block, n_batch_blocks):
    F = x2d.shape[1]
    H = whh.shape[0]
    padded_len = n_time_blocks * tile_t
    rows_per_tile = tile_t * batch_block

    kernel = functools.partial(
        _gru_fc_kernel,
        tile_t=tile_t, batch_block=batch_block, seq_len=seq_len,
        mask_tail=(padded_len != seq_len),
        skip_dead_tiles=((padded_len - seq_len) >= tile_t))

    nbytes = lambda a: a.size * a.dtype.itemsize
    cost = pl.CostEstimate(
        flops=2 * n_batch_blocks * padded_len * batch_block
              * (F * 3 * H + H * 3 * H),
        transcendentals=n_batch_blocks * padded_len * batch_block * 3 * H,
        bytes_accessed=(nbytes(x2d) + nbytes(wih) + nbytes(whh) + nbytes(bx)
                        + nbytes(bhn) + nbytes(wfc) + nbytes(bfc)
                        + n_batch_blocks * batch_block * 4),
    )

    return pl.pallas_call(
        kernel,
        out_shape=jax.ShapeDtypeStruct((n_batch_blocks * batch_block, 1),
                                       jnp.float32),
        grid_spec=pltpu.PrefetchScalarGridSpec(
            num_scalar_prefetch=0,
            grid=(n_batch_blocks, n_time_blocks),
            in_specs=[
                # x2d rows are laid out (batch_block-major, then time, then BB)
                # so block index along rows is b * n_time_blocks + t.
                pl.BlockSpec((rows_per_tile, F),
                             lambda b, t, nt=n_time_blocks: (b * nt + t, 0)),
                pl.BlockSpec((F, 3 * H), lambda b, t: (0, 0)),
                pl.BlockSpec((H, 3 * H), lambda b, t: (0, 0)),
                pl.BlockSpec((1, 3 * H), lambda b, t: (0, 0)),
                pl.BlockSpec((1, H), lambda b, t: (0, 0)),
                pl.BlockSpec((1, H), lambda b, t: (0, 0)),
                pl.BlockSpec((1, 1), lambda b, t: (0, 0)),
            ],
            out_specs=pl.BlockSpec((batch_block, 1), lambda b, t: (b, 0)),
            scratch_shapes=[
                pltpu.VMEM((batch_block, H), jnp.float32),            # h state
                pltpu.VMEM((rows_per_tile, 3 * H), jnp.float32),      # x-gates
            ],
        ),
        compiler_params=pltpu.CompilerParams(
            # Batch blocks are independent (megacore-shardable on v7x); the
            # time axis carries the serial recurrence.
            dimension_semantics=("parallel", "arbitrary")),
        cost_estimate=cost,
    )(x2d, wih, whh, bx, bhn, wfc, bfc)


def init_params(key):
    """Deterministic params matching the PyTorch module's shapes, pre-packed
    for the kernel (per-gate-transposed weights, pre-added r/z biases)."""
    keys = jax.random.split(key, 7)
    H = HIDDEN_SIZE
    bound = 1.0 / (H ** 0.5)

    emb = jax.random.normal(keys[0], (ITEM_NUM, EMBEDDING_SIZE), jnp.float32)
    emb = emb.at[0].set(0.0)                                  # padding_idx=0

    # PyTorch GRU layout: weight_ih (3H, F), weight_hh (3H, H), gate order r,z,n.
    w_ih = jax.random.uniform(keys[1], (3 * H, INPUT_SIZE), jnp.float32,
                              -bound, bound)
    w_hh = jax.random.uniform(keys[2], (3 * H, H), jnp.float32, -bound, bound)
    b_ih = jax.random.uniform(keys[3], (3 * H,), jnp.float32, -bound, bound)
    b_hh = jax.random.uniform(keys[4], (3 * H,), jnp.float32, -bound, bound)
    fc_w = jax.random.uniform(keys[5], (1, H), jnp.float32, -bound, bound)
    fc_b = jax.random.uniform(keys[6], (1,), jnp.float32, -bound, bound)

    wih_f32 = w_ih.T                       # (F, 3H) = [W_ir^T | W_iz^T | W_in^T]
    whh_f32 = w_hh.T                       # (H, 3H)
    bx = jnp.concatenate([b_ih[:2 * H] + b_hh[:2 * H], b_ih[2 * H:]]
                         ).reshape(1, 3 * H)
    bhn = b_hh[2 * H:].reshape(1, H)

    return dict(
        emb=emb,
        wih_f32=wih_f32, whh_f32=whh_f32,                    # f32 (reference)
        wih_mm=wih_f32.astype(MATMUL_DTYPE),                 # bf16 (kernel)
        whh_mm=whh_f32.astype(MATMUL_DTYPE),
        bx=bx, bhn=bhn,
        wfc=fc_w,                                            # (1, H)
        bfc=fc_b.reshape(1, 1),                              # (1, 1)
    )


@jax.jit
def net_forward(x, params):
    """x: (B, T, 3) float32; channel 0 = time, 1 = item id, 2 = value."""
    B, T, _ = x.shape
    # Embedding gather / concat / transpose / padding are XLA glue.
    x_time = x[:, :, 0:1].astype(jnp.float32)
    x_item = x[:, :, 1].astype(jnp.int32)
    x_value = x[:, :, 2:3].astype(jnp.float32)
    emb = jnp.take(params["emb"], x_item, axis=0)                 # (B, T, E)
    xc = jnp.concatenate([x_time, emb, x_value], axis=2)          # (B, T, F)

    # Batch blocking: whole (padded) batch in one block when small, else
    # MAX_BATCH_BLOCK-row blocks so megacore (v7x) can split them and VMEM
    # stays within budget.
    bp_min = _round_up(max(B, 8), 8)
    if bp_min <= MAX_BATCH_BLOCK:
        BB, NB = bp_min, 1
    else:
        BB = MAX_BATCH_BLOCK
        NB = -(-bp_min // BB)
    Bp = NB * BB

    TT, n_t = _choose_time_tile(T, BB)
    Tp = n_t * TT

    # (B,T,F) -> pad -> (NB, BB, Tp, F) -> (NB, Tp, BB, F) -> (NB*Tp*BB, F)
    xp = jnp.pad(xc, ((0, Bp - B), (0, Tp - T), (0, 0)))
    xp = xp.reshape(NB, BB, Tp, INPUT_SIZE).transpose(0, 2, 1, 3)
    x2d = xp.reshape(NB * Tp * BB, INPUT_SIZE).astype(MATMUL_DTYPE)
    # TODO(synk): time/value scalar channels are cast to bf16 alongside the
    # embedding; drift vs the f32 reference grows with T (tolerance is
    # T-dependent). Keep them f32-exact if long sequences need tighter error.

    out = _gru_fc_pallas(x2d, params["wih_mm"], params["whh_mm"],
                         params["bx"], params["bhn"],
                         params["wfc"], params["bfc"],
                         seq_len=T, tile_t=TT, n_time_blocks=n_t,
                         batch_block=BB, n_batch_blocks=NB)        # (Bp, 1)
    return out[:B, 0]                                              # (B,)


def net_forward_ref(x, params, matmul_dtype=jnp.float32):
    """Pure-JAX reference of the PyTorch forward.  With matmul_dtype=bf16 it
    mirrors the kernel's matmul-input precision (f32 accumulate/elementwise)."""
    H = HIDDEN_SIZE
    x_time = x[:, :, 0:1].astype(jnp.float32)
    x_item = x[:, :, 1].astype(jnp.int32)
    x_value = x[:, :, 2:3].astype(jnp.float32)
    emb = jnp.take(params["emb"], x_item, axis=0)
    xc = jnp.concatenate([x_time, emb, x_value], axis=2)          # (B, T, F)
    B = xc.shape[0]

    wih = params["wih_f32"].astype(matmul_dtype)
    whh = params["whh_f32"].astype(matmul_dtype)
    bx, bhn = params["bx"], params["bhn"]

    def step(h, x_t):
        gx = jnp.dot(x_t.astype(matmul_dtype), wih,
                     preferred_element_type=jnp.float32) + bx
        gh = jnp.dot(h.astype(matmul_dtype), whh,
                     preferred_element_type=jnp.float32)
        r = jax.nn.sigmoid(gx[:, :H] + gh[:, :H])
        z = jax.nn.sigmoid(gx[:, H:2 * H] + gh[:, H:2 * H])
        n = jnp.tanh(gx[:, 2 * H:] + r * (gh[:, 2 * H:] + bhn))
        return (1.0 - z) * n + z * h, None

    h0 = jnp.zeros((B, H), jnp.float32)
    h_last, _ = lax.scan(step, h0, jnp.transpose(xc, (1, 0, 2)))
    logits = jnp.sum(h_last * params["wfc"], axis=-1) + params["bfc"][0, 0]
    return jax.nn.sigmoid(logits)


if __name__ == "__main__":
    key = jax.random.PRNGKey(0)
    pkey, dkey = jax.random.split(key)
    params = init_params(pkey)

    batch, seq = 2, 8
    k_t, k_i, k_v = jax.random.split(dkey, 3)
    x_time = jax.random.uniform(k_t, (batch, seq, 1), jnp.float32)
    x_item = jax.random.randint(k_i, (batch, seq, 1), 0, ITEM_NUM
                                ).astype(jnp.float32)
    x_value = jax.random.uniform(k_v, (batch, seq, 1), jnp.float32)
    x = jnp.concatenate([x_time, x_item, x_value], axis=2)        # (B, T, 3)

    out = jax.block_until_ready(net_forward(x, params))
    assert out.shape == (batch,), out.shape

    # Tight check vs a reference mirroring the kernel's bf16-matmul /
    # f32-accumulate numerics.
    ref_mm = jax.block_until_ready(net_forward_ref(x, params, MATMUL_DTYPE))
    assert jnp.allclose(out, ref_mm, atol=1e-3, rtol=1e-3), (out, ref_mm)

    # Loose check vs the fully-f32 PyTorch-faithful reference (bounds the
    # bf16 matmul-input drift accumulated over the recurrence; T-dependent).
    ref_f32 = jax.block_until_ready(net_forward_ref(x, params, jnp.float32))
    assert jnp.allclose(out, ref_f32, atol=1e-2, rtol=0.0), (out, ref_f32)

    print("KERNEL_OK")
</pallas_src>

<mosaic_0001>
module attributes {stable_mosaic.version = 11 : i64} {
  func.func @_gru_fc_kernel(%arg0: i32, %arg1: i32, %arg2: memref<64x66xbf16, #tpu.memory_space<vmem>>, %arg3: memref<66x192xbf16, #tpu.memory_space<vmem>>, %arg4: memref<64x192xbf16, #tpu.memory_space<vmem>>, %arg5: memref<1x192xf32, #tpu.memory_space<vmem>>, %arg6: memref<1x64xf32, #tpu.memory_space<vmem>>, %arg7: memref<1x64xf32, #tpu.memory_space<vmem>>, %arg8: memref<1x1xf32, #tpu.memory_space<vmem>>, %arg9: memref<8x1xf32, #tpu.memory_space<vmem>>, %arg10: memref<8x64xf32, #tpu.memory_space<vmem>>, %arg11: memref<64x192xf32, #tpu.memory_space<vmem>>) attributes {dimension_semantics = [#tpu.dimension_semantics<parallel>, #tpu.dimension_semantics<arbitrary>], iteration_bounds = array<i64: 1, 1>, scalar_prefetch = 0 : i64, scratch_operands = 2 : i64, tpu.core_type = #tpu.core_type<tc>, window_params = [{transform_indices = @transform_0, window_bounds = array<i64: 64, 66>}, {pipeline_mode = #tpu.pipeline_mode<synchronous>, transform_indices = @transform_1, window_bounds = array<i64: 66, 192>}, {pipeline_mode = #tpu.pipeline_mode<synchronous>, transform_indices = @transform_2, window_bounds = array<i64: 64, 192>}, {pipeline_mode = #tpu.pipeline_mode<synchronous>, transform_indices = @transform_3, window_bounds = array<i64: 1, 192>}, {pipeline_mode = #tpu.pipeline_mode<synchronous>, transform_indices = @transform_4, window_bounds = array<i64: 1, 64>}, {pipeline_mode = #tpu.pipeline_mode<synchronous>, transform_indices = @transform_5, window_bounds = array<i64: 1, 64>}, {pipeline_mode = #tpu.pipeline_mode<synchronous>, transform_indices = @transform_6, window_bounds = array<i64: 1, 1>}, {transform_indices = @transform_7, window_bounds = array<i64: 8, 1>}]} {
    %c0_i32 = arith.constant 0 : i32
    %0 = arith.cmpi eq, %arg1, %c0_i32 : i32
    %1 = arith.extui %0 : i1 to i32
    %c0_i32_0 = arith.constant 0 : i32
    %2 = arith.cmpi ne, %1, %c0_i32_0 : i32
    scf.if %2 {
      %cst_51 = arith.constant 0.000000e+00 : f32
      %219 = vector.broadcast %cst_51 : f32 to vector<8x64xf32>
      %c0_52 = arith.constant 0 : index
      %c0_53 = arith.constant 0 : index
      %220 = vector.load %arg10[%c0_52, %c0_53] : memref<8x64xf32, #tpu.memory_space<vmem>>, vector<8x64xf32>
      tpu.vector_store %arg10[%c0_52, %c0_53], %219 {strides = array<i32>} : memref<8x64xf32, #tpu.memory_space<vmem>>, vector<8x64xf32>,
    } else {
    }
    %c0 = arith.constant 0 : index
    %c0_1 = arith.constant 0 : index
    %3 = vector.load %arg2[%c0, %c0_1] : memref<64x66xbf16, #tpu.memory_space<vmem>>, vector<64x66xbf16>
    %c0_2 = arith.constant 0 : index
    %c0_3 = arith.constant 0 : index
    %4 = vector.load %arg3[%c0_2, %c0_3] : memref<66x192xbf16, #tpu.memory_space<vmem>>, vector<66x192xbf16>
    %cst = arith.constant dense<0.000000e+00> : vector<64x192xf32>
    %5 = tpu.matmul %3, %4, %cst {dimension_numbers = #tpu.dot_dimension_numbers<[1], [0], [0], [1], [0, 0, 1, 1], [], []>} : vector<64x66xbf16>, vector<66x192xbf16>, vector<64x192xf32> -> vector<64x192xf32>
    %c0_4 = arith.constant 0 : index
    %c0_5 = arith.constant 0 : index
    %6 = vector.load %arg5[%c0_4, %c0_5] : memref<1x192xf32, #tpu.memory_space<vmem>>, vector<1x192xf32>
    %7 = vector.broadcast %6 : vector<1x192xf32> to vector<64x192xf32>
    %8 = arith.addf %5, %7 : vector<64x192xf32>
    %c0_6 = arith.constant 0 : index
    %c0_7 = arith.constant 0 : index
    %9 = vector.load %arg11[%c0_6, %c0_7] : memref<64x192xf32, #tpu.memory_space<vmem>>, vector<64x192xf32>
    tpu.vector_store %arg11[%c0_6, %c0_7], %8 {strides = array<i32>} : memref<64x192xf32, #tpu.memory_space<vmem>>, vector<64x192xf32>,
    %c0_8 = arith.constant 0 : index
    %c0_9 = arith.constant 0 : index
    %10 = vector.load %arg4[%c0_8, %c0_9] : memref<64x192xbf16, #tpu.memory_space<vmem>>, vector<64x192xbf16>
    %c0_10 = arith.constant 0 : index
    %c0_11 = arith.constant 0 : index
    %11 = vector.load %arg6[%c0_10, %c0_11] : memref<1x64xf32, #tpu.memory_space<vmem>>, vector<1x64xf32>
    %12 = vector.shape_cast %11 : vector<1x64xf32> to vector<1x64xf32>
    %13 = vector.broadcast %12 : vector<1x64xf32> to vector<8x64xf32>
    %c0_12 = arith.constant 0 : index
    %c0_13 = arith.constant 0 : index
    %14 = vector.load %arg10[%c0_12, %c0_13] : memref<8x64xf32, #tpu.memory_space<vmem>>, vector<8x64xf32>
    %c0_i32_14 = arith.constant 0 : i32
    %c8_i32 = arith.constant 8 : i32
    %15 = arith.muli %c0_i32_14, %c8_i32 : i32
    %16 = tpu.assume_multiple %15, 8 : i32
    %17 = arith.index_cast %16 : i32 to index
    %c0_15 = arith.constant 0 : index
    %18 = vector.load %arg11[%17, %c0_15] : memref<64x192xf32, #tpu.memory_space<vmem>>, vector<8x192xf32>
    %19 = arith.truncf %14 : vector<8x64xf32> to vector<8x64xbf16>
    %cst_16 = arith.constant dense<0.000000e+00> : vector<8x192xf32>
    %20 = tpu.matmul %19, %10, %cst_16 {dimension_numbers = #tpu.dot_dimension_numbers<[1], [0], [0], [1], [0, 0, 1, 1], [], []>} : vector<8x64xbf16>, vector<64x192xbf16>, vector<8x192xf32> -> vector<8x192xf32>
    %21 = vector.extract_strided_slice %18 {offsets = [0, 0], sizes = [8, 128], strides = [1, 1]} : vector<8x192xf32> to vector<8x128xf32>
    %22 = vector.extract_strided_slice %20 {offsets = [0, 0], sizes = [8, 128], strides = [1, 1]} : vector<8x192xf32> to vector<8x128xf32>
    %23 = arith.addf %21, %22 : vector<8x128xf32>
    %24 = arith.negf %23 : vector<8x128xf32>
    %25 = math.exp %24 : vector<8x128xf32>
    %cst_17 = arith.constant 1.000000e+00 : f32
    %26 = vector.broadcast %cst_17 : f32 to vector<8x128xf32>
    %27 = arith.addf %26, %25 : vector<8x128xf32>
    %28 = arith.divf %26, %27 : vector<8x128xf32>
    %29 = vector.extract_strided_slice %28 {offsets = [0, 64], sizes = [8, 64], strides = [1, 1]} : vector<8x128xf32> to vector<8x64xf32>
    %30 = vector.extract_strided_slice %18 {offsets = [0, 128], sizes = [8, 64], strides = [1, 1]} : vector<8x192xf32> to vector<8x64xf32>
    %31 = vector.extract_strided_slice %28 {offsets = [0, 0], sizes = [8, 64], strides = [1, 1]} : vector<8x128xf32> to vector<8x64xf32>
    %32 = vector.extract_strided_slice %20 {offsets = [0, 128], sizes = [8, 64], strides = [1, 1]} : vector<8x192xf32> to vector<8x64xf32>
    %33 = arith.addf %32, %13 : vector<8x64xf32>
    %34 = arith.mulf %31, %33 : vector<8x64xf32>
    %35 = arith.addf %30, %34 : vector<8x64xf32>
    %36 = math.tanh %35 : vector<8x64xf32>
    %37 = arith.subf %14, %36 : vector<8x64xf32>
    %38 = arith.mulf %29, %37 : vector<8x64xf32>
    %39 = arith.addf %36, %38 : vector<8x64xf32>
    %c1_i32 = arith.constant 1 : i32
    %c8_i32_18 = arith.constant 8 : i32
    %40 = arith.muli %c1_i32, %c8_i32_18 : i32
    %41 = tpu.assume_multiple %40, 8 : i32
    %42 = arith.index_cast %41 : i32 to index
    %c0_19 = arith.constant 0 : index
    %43 = vector.load %arg11[%42, %c0_19] : memref<64x192xf32, #tpu.memory_space<vmem>>, vector<8x192xf32>
    %44 = arith.truncf %39 : vector<8x64xf32> to vector<8x64xbf16>
    %cst_20 = arith.constant dense<0.000000e+00> : vector<8x192xf32>
    %45 = tpu.matmul %44, %10, %cst_20 {dimension_numbers = #tpu.dot_dimension_numbers<[1], [0], [0], [1], [0, 0, 1, 1], [], []>} : vector<8x64xbf16>, vector<64x192xbf16>, vector<8x192xf32> -> vector<8x192xf32>
    %46 = vector.extract_strided_slice %43 {offsets = [0, 0], sizes = [8, 128], strides = [1, 1]} : vector<8x192xf32> to vector<8x128xf32>
    %47 = vector.extract_strided_slice %45 {offsets = [0, 0], sizes = [8, 128], strides = [1, 1]} : vector<8x192xf32> to vector<8x128xf32>
    %48 = arith.addf %46, %47 : vector<8x128xf32>
    %49 = arith.negf %48 : vector<8x128xf32>
    %50 = math.exp %49 : vector<8x128xf32>
    %cst_21 = arith.constant 1.000000e+00 : f32
    %51 = vector.broadcast %cst_21 : f32 to vector<8x128xf32>
    %52 = arith.addf %51, %50 : vector<8x128xf32>
    %53 = arith.divf %51, %52 : vector<8x128xf32>
    %54 = vector.extract_strided_slice %53 {offsets = [0, 64], sizes = [8, 64], strides = [1, 1]} : vector<8x128xf32> to vector<8x64xf32>
    %55 = vector.extract_strided_slice %43 {offsets = [0, 128], sizes = [8, 64], strides = [1, 1]} : vector<8x192xf32> to vector<8x64xf32>
    %56 = vector.extract_strided_slice %53 {offsets = [0, 0], sizes = [8, 64], strides = [1, 1]} : vector<8x128xf32> to vector<8x64xf32>
    %57 = vector.extract_strided_slice %45 {offsets = [0, 128], sizes = [8, 64], strides = [1, 1]} : vector<8x192xf32> to vector<8x64xf32>
    %58 = arith.addf %57, %13 : vector<8x64xf32>
    %59 = arith.mulf %56, %58 : vector<8x64xf32>
    %60 = arith.addf %55, %59 : vector<8x64xf32>
    %61 = math.tanh %60 : vector<8x64xf32>
    %62 = arith.subf %39, %61 : vector<8x64xf32>
    %63 = arith.mulf %54, %62 : vector<8x64xf32>
    %64 = arith.addf %61, %63 : vector<8x64xf32>
    %c2_i32 = arith.constant 2 : i32
    %c8_i32_22 = arith.constant 8 : i32
    %65 = arith.muli %c2_i32, %c8_i32_22 : i32
    %66 = tpu.assume_multiple %65, 8 : i32
    %67 = arith.index_cast %66 : i32 to index
    %c0_23 = arith.constant 0 : index
    %68 = vector.load %arg11[%67, %c0_23] : memref<64x192xf32, #tpu.memory_space<vmem>>, vector<8x192xf32>
    %69 = arith.truncf %64 : vector<8x64xf32> to vector<8x64xbf16>
    %cst_24 = arith.constant dense<0.000000e+00> : vector<8x192xf32>
    %70 = tpu.matmul %69, %10, %cst_24 {dimension_numbers = #tpu.dot_dimension_numbers<[1], [0], [0], [1], [0, 0, 1, 1], [], []>} : vector<8x64xbf16>, vector<64x192xbf16>, vector<8x192xf32> -> vector<8x192xf32>
    %71 = vector.extract_strided_slice %68 {offsets = [0, 0], sizes = [8, 128], strides = [1, 1]} : vector<8x192xf32> to vector<8x128xf32>
    %72 = vector.extract_strided_slice %70 {offsets = [0, 0], sizes = [8, 128], strides = [1, 1]} : vector<8x192xf32> to vector<8x128xf32>
    %73 = arith.addf %71, %72 : vector<8x128xf32>
    %74 = arith.negf %73 : vector<8x128xf32>
    %75 = math.exp %74 : vector<8x128xf32>
    %cst_25 = arith.constant 1.000000e+00 : f32
    %76 = vector.broadcast %cst_25 : f32 to vector<8x128xf32>
    %77 = arith.addf %76, %75 : vector<8x128xf32>
    %78 = arith.divf %76, %77 : vector<8x128xf32>
    %79 = vector.extract_strided_slice %78 {offsets = [0, 64], sizes = [8, 64], strides = [1, 1]} : vector<8x128xf32> to vector<8x64xf32>
    %80 = vector.extract_strided_slice %68 {offsets = [0, 128], sizes = [8, 64], strides = [1, 1]} : vector<8x192xf32> to vector<8x64xf32>
    %81 = vector.extract_strided_slice %78 {offsets = [0, 0], sizes = [8, 64], strides = [1, 1]} : vector<8x128xf32> to vector<8x64xf32>
    %82 = vector.extract_strided_slice %70 {offsets = [0, 128], sizes = [8, 64], strides = [1, 1]} : vector<8x192xf32> to vector<8x64xf32>
    %83 = arith.addf %82, %13 : vector<8x64xf32>
    %84 = arith.mulf %81, %83 : vector<8x64xf32>
    %85 = arith.addf %80, %84 : vector<8x64xf32>
    %86 = math.tanh %85 : vector<8x64xf32>
    %87 = arith.subf %64, %86 : vector<8x64xf32>
    %88 = arith.mulf %79, %87 : vector<8x64xf32>
    %89 = arith.addf %86, %88 : vector<8x64xf32>
    %c3_i32 = arith.constant 3 : i32
    %c8_i32_26 = arith.constant 8 : i32
    %90 = arith.muli %c3_i32, %c8_i32_26 : i32
    %91 = tpu.assume_multiple %90, 8 : i32
    %92 = arith.index_cast %91 : i32 to index
    %c0_27 = arith.constant 0 : index
    %93 = vector.load %arg11[%92, %c0_27] : memref<64x192xf32, #tpu.memory_space<vmem>>, vector<8x192xf32>
    %94 = arith.truncf %89 : vector<8x64xf32> to vector<8x64xbf16>
    %cst_28 = arith.constant dense<0.000000e+00> : vector<8x192xf32>
    %95 = tpu.matmul %94, %10, %cst_28 {dimension_numbers = #tpu.dot_dimension_numbers<[1], [0], [0], [1], [0, 0, 1, 1], [], []>} : vector<8x64xbf16>, vector<64x192xbf16>, vector<8x192xf32> -> vector<8x192xf32>
    %96 = vector.extract_strided_slice %93 {offsets = [0, 0], sizes = [8, 128], strides = [1, 1]} : vector<8x192xf32> to vector<8x128xf32>
    %97 = vector.extract_strided_slice %95 {offsets = [0, 0], sizes = [8, 128], strides = [1, 1]} : vector<8x192xf32> to vector<8x128xf32>
    %98 = arith.addf %96, %97 : vector<8x128xf32>
    %99 = arith.negf %98 : vector<8x128xf32>
    %100 = math.exp %99 : vector<8x128xf32>
    %cst_29 = arith.constant 1.000000e+00 : f32
    %101 = vector.broadcast %cst_29 : f32 to vector<8x128xf32>
    %102 = arith.addf %101, %100 : vector<8x128xf32>
    %103 = arith.divf %101, %102 : vector<8x128xf32>
    %104 = vector.extract_strided_slice %103 {offsets = [0, 64], sizes = [8, 64], strides = [1, 1]} : vector<8x128xf32> to vector<8x64xf32>
    %105 = vector.extract_strided_slice %93 {offsets = [0, 128], sizes = [8, 64], strides = [1, 1]} : vector<8x192xf32> to vector<8x64xf32>
    %106 = vector.extract_strided_slice %103 {offsets = [0, 0], sizes = [8, 64], strides = [1, 1]} : vector<8x128xf32> to vector<8x64xf32>
    %107 = vector.extract_strided_slice %95 {offsets = [0, 128], sizes = [8, 64], strides = [1, 1]} : vector<8x192xf32> to vector<8x64xf32>
    %108 = arith.addf %107, %13 : vector<8x64xf32>
    %109 = arith.mulf %106, %108 : vector<8x64xf32>
    %110 = arith.addf %105, %109 : vector<8x64xf32>
    %111 = math.tanh %110 : vector<8x64xf32>
    %112 = arith.subf %89, %111 : vector<8x64xf32>
    %113 = arith.mulf %104, %112 : vector<8x64xf32>
    %114 = arith.addf %111, %113 : vector<8x64xf32>
    %c4_i32 = arith.constant 4 : i32
    %c8_i32_30 = arith.constant 8 : i32
    %115 = arith.muli %c4_i32, %c8_i32_30 : i32
    %116 = tpu.assume_multiple %115, 8 : i32
    %117 = arith.index_cast %116 : i32 to index
    %c0_31 = arith.constant 0 : index
    %118 = vector.load %arg11[%117, %c0_31] : memref<64x192xf32, #tpu.memory_space<vmem>>, vector<8x192xf32>
    %119 = arith.truncf %114 : vector<8x64xf32> to vector<8x64xbf16>
    %cst_32 = arith.constant dense<0.000000e+00> : vector<8x192xf32>
    %120 = tpu.matmul %119, %10, %cst_32 {dimension_numbers = #tpu.dot_dimension_numbers<[1], [0], [0], [1], [0, 0, 1, 1], [], []>} : vector<8x64xbf16>, vector<64x192xbf16>, vector<8x192xf32> -> vector<8x192xf32>
    %121 = vector.extract_strided_slice %118 {offsets = [0, 0], sizes = [8, 128], strides = [1, 1]} : vector<8x192xf32> to vector<8x128xf32>
    %122 = vector.extract_strided_slice %120 {offsets = [0, 0], sizes = [8, 128], strides = [1, 1]} : vector<8x192xf32> to vector<8x128xf32>
    %123 = arith.addf %121, %122 : vector<8x128xf32>
    %124 = arith.negf %123 : vector<8x128xf32>
    %125 = math.exp %124 : vector<8x128xf32>
    %cst_33 = arith.constant 1.000000e+00 : f32
    %126 = vector.broadcast %cst_33 : f32 to vector<8x128xf32>
    %127 = arith.addf %126, %125 : vector<8x128xf32>
    %128 = arith.divf %126, %127 : vector<8x128xf32>
    %129 = vector.extract_strided_slice %128 {offsets = [0, 64], sizes = [8, 64], strides = [1, 1]} : vector<8x128xf32> to vector<8x64xf32>
    %130 = vector.extract_strided_slice %118 {offsets = [0, 128], sizes = [8, 64], strides = [1, 1]} : vector<8x192xf32> to vector<8x64xf32>
    %131 = vector.extract_strided_slice %128 {offsets = [0, 0], sizes = [8, 64], strides = [1, 1]} : vector<8x128xf32> to vector<8x64xf32>
    %132 = vector.extract_strided_slice %120 {offsets = [0, 128], sizes = [8, 64], strides = [1, 1]} : vector<8x192xf32> to vector<8x64xf32>
    %133 = arith.addf %132, %13 : vector<8x64xf32>
    %134 = arith.mulf %131, %133 : vector<8x64xf32>
    %135 = arith.addf %130, %134 : vector<8x64xf32>
    %136 = math.tanh %135 : vector<8x64xf32>
    %137 = arith.subf %114, %136 : vector<8x64xf32>
    %138 = arith.mulf %129, %137 : vector<8x64xf32>
    %139 = arith.addf %136, %138 : vector<8x64xf32>
    %c5_i32 = arith.constant 5 : i32
    %c8_i32_34 = arith.constant 8 : i32
    %140 = arith.muli %c5_i32, %c8_i32_34 : i32
    %141 = tpu.assume_multiple %140, 8 : i32
    %142 = arith.index_cast %141 : i32 to index
    %c0_35 = arith.constant 0 : index
    %143 = vector.load %arg11[%142, %c0_35] : memref<64x192xf32, #tpu.memory_space<vmem>>, vector<8x192xf32>
    %144 = arith.truncf %139 : vector<8x64xf32> to vector<8x64xbf16>
    %cst_36 = arith.constant dense<0.000000e+00> : vector<8x192xf32>
    %145 = tpu.matmul %144, %10, %cst_36 {dimension_numbers = #tpu.dot_dimension_numbers<[1], [0], [0], [1], [0, 0, 1, 1], [], []>} : vector<8x64xbf16>, vector<64x192xbf16>, vector<8x192xf32> -> vector<8x192xf32>
    %146 = vector.extract_strided_slice %143 {offsets = [0, 0], sizes = [8, 128], strides = [1, 1]} : vector<8x192xf32> to vector<8x128xf32>
    %147 = vector.extract_strided_slice %145 {offsets = [0, 0], sizes = [8, 128], strides = [1, 1]} : vector<8x192xf32> to vector<8x128xf32>
    %148 = arith.addf %146, %147 : vector<8x128xf32>
    %149 = arith.negf %148 : vector<8x128xf32>
    %150 = math.exp %149 : vector<8x128xf32>
    %cst_37 = arith.constant 1.000000e+00 : f32
    %151 = vector.broadcast %cst_37 : f32 to vector<8x128xf32>
    %152 = arith.addf %151, %150 : vector<8x128xf32>
    %153 = arith.divf %151, %152 : vector<8x128xf32>
    %154 = vector.extract_strided_slice %153 {offsets = [0, 64], sizes = [8, 64], strides = [1, 1]} : vector<8x128xf32> to vector<8x64xf32>
    %155 = vector.extract_strided_slice %143 {offsets = [0, 128], sizes = [8, 64], strides = [1, 1]} : vector<8x192xf32> to vector<8x64xf32>
    %156 = vector.extract_strided_slice %153 {offsets = [0, 0], sizes = [8, 64], strides = [1, 1]} : vector<8x128xf32> to vector<8x64xf32>
    %157 = vector.extract_strided_slice %145 {offsets = [0, 128], sizes = [8, 64], strides = [1, 1]} : vector<8x192xf32> to vector<8x64xf32>
    %158 = arith.addf %157, %13 : vector<8x64xf32>
    %159 = arith.mulf %156, %158 : vector<8x64xf32>
    %160 = arith.addf %155, %159 : vector<8x64xf32>
    %161 = math.tanh %160 : vector<8x64xf32>
    %162 = arith.subf %139, %161 : vector<8x64xf32>
    %163 = arith.mulf %154, %162 : vector<8x64xf32>
    %164 = arith.addf %161, %163 : vector<8x64xf32>
    %c6_i32 = arith.constant 6 : i32
    %c8_i32_38 = arith.constant 8 : i32
    %165 = arith.muli %c6_i32, %c8_i32_38 : i32
    %166 = tpu.assume_multiple %165, 8 : i32
    %167 = arith.index_cast %166 : i32 to index
    %c0_39 = arith.constant 0 : index
    %168 = vector.load %arg11[%167, %c0_39] : memref<64x192xf32, #tpu.memory_space<vmem>>, vector<8x192xf32>
    %169 = arith.truncf %164 : vector<8x64xf32> to vector<8x64xbf16>
    %cst_40 = arith.constant dense<0.000000e+00> : vector<8x192xf32>
    %170 = tpu.matmul %169, %10, %cst_40 {dimension_numbers = #tpu.dot_dimension_numbers<[1], [0], [0], [1], [0, 0, 1, 1], [], []>} : vector<8x64xbf16>, vector<64x192xbf16>, vector<8x192xf32> -> vector<8x192xf32>
    %171 = vector.extract_strided_slice %168 {offsets = [0, 0], sizes = [8, 128], strides = [1, 1]} : vector<8x192xf32> to vector<8x128xf32>
    %172 = vector.extract_strided_slice %170 {offsets = [0, 0], sizes = [8, 128], strides = [1, 1]} : vector<8x192xf32> to vector<8x128xf32>
    %173 = arith.addf %171, %172 : vector<8x128xf32>
    %174 = arith.negf %173 : vector<8x128xf32>
    %175 = math.exp %174 : vector<8x128xf32>
    %cst_41 = arith.constant 1.000000e+00 : f32
    %176 = vector.broadcast %cst_41 : f32 to vector<8x128xf32>
    %177 = arith.addf %176, %175 : vector<8x128xf32>
    %178 = arith.divf %176, %177 : vector<8x128xf32>
    %179 = vector.extract_strided_slice %178 {offsets = [0, 64], sizes = [8, 64], strides = [1, 1]} : vector<8x128xf32> to vector<8x64xf32>
    %180 = vector.extract_strided_slice %168 {offsets = [0, 128], sizes = [8, 64], strides = [1, 1]} : vector<8x192xf32> to vector<8x64xf32>
    %181 = vector.extract_strided_slice %178 {offsets = [0, 0], sizes = [8, 64], strides = [1, 1]} : vector<8x128xf32> to vector<8x64xf32>
    %182 = vector.extract_strided_slice %170 {offsets = [0, 128], sizes = [8, 64], strides = [1, 1]} : vector<8x192xf32> to vector<8x64xf32>
    %183 = arith.addf %182, %13 : vector<8x64xf32>
    %184 = arith.mulf %181, %183 : vector<8x64xf32>
    %185 = arith.addf %180, %184 : vector<8x64xf32>
    %186 = math.tanh %185 : vector<8x64xf32>
    %187 = arith.subf %164, %186 : vector<8x64xf32>
    %188 = arith.mulf %179, %187 : vector<8x64xf32>
    %189 = arith.addf %186, %188 : vector<8x64xf32>
    %c7_i32 = arith.constant 7 : i32
    %c8_i32_42 = arith.constant 8 : i32
    %190 = arith.muli %c7_i32, %c8_i32_42 : i32
    %191 = tpu.assume_multiple %190, 8 : i32
    %192 = arith.index_cast %191 : i32 to index
    %c0_43 = arith.constant 0 : index
    %193 = vector.load %arg11[%192, %c0_43] : memref<64x192xf32, #tpu.memory_space<vmem>>, vector<8x192xf32>
    %194 = arith.truncf %189 : vector<8x64xf32> to vector<8x64xbf16>
    %cst_44 = arith.constant dense<0.000000e+00> : vector<8x192xf32>
    %195 = tpu.matmul %194, %10, %cst_44 {dimension_numbers = #tpu.dot_dimension_numbers<[1], [0], [0], [1], [0, 0, 1, 1], [], []>} : vector<8x64xbf16>, vector<64x192xbf16>, vector<8x192xf32> -> vector<8x192xf32>
    %196 = vector.extract_strided_slice %193 {offsets = [0, 0], sizes = [8, 128], strides = [1, 1]} : vector<8x192xf32> to vector<8x128xf32>
    %197 = vector.extract_strided_slice %195 {offsets = [0, 0], sizes = [8, 128], strides = [1, 1]} : vector<8x192xf32> to vector<8x128xf32>
    %198 = arith.addf %196, %197 : vector<8x128xf32>
    %199 = arith.negf %198 : vector<8x128xf32>
    %200 = math.exp %199 : vector<8x128xf32>
    %cst_45 = arith.constant 1.000000e+00 : f32
    %201 = vector.broadcast %cst_45 : f32 to vector<8x128xf32>
    %202 = arith.addf %201, %200 : vector<8x128xf32>
    %203 = arith.divf %201, %202 : vector<8x128xf32>
    %204 = vector.extract_strided_slice %203 {offsets = [0, 64], sizes = [8, 64], strides = [1, 1]} : vector<8x128xf32> to vector<8x64xf32>
    %205 = vector.extract_strided_slice %193 {offsets = [0, 128], sizes = [8, 64], strides = [1, 1]} : vector<8x192xf32> to vector<8x64xf32>
    %206 = vector.extract_strided_slice %203 {offsets = [0, 0], sizes = [8, 64], strides = [1, 1]} : vector<8x128xf32> to vector<8x64xf32>
    %207 = vector.extract_strided_slice %195 {offsets = [0, 128], sizes = [8, 64], strides = [1, 1]} : vector<8x192xf32> to vector<8x64xf32>
    %208 = arith.addf %207, %13 : vector<8x64xf32>
    %209 = arith.mulf %206, %208 : vector<8x64xf32>
    %210 = arith.addf %205, %209 : vector<8x64xf32>
    %211 = math.tanh %210 : vector<8x64xf32>
    %212 = arith.subf %189, %211 : vector<8x64xf32>
    %213 = arith.mulf %204, %212 : vector<8x64xf32>
    %214 = arith.addf %211, %213 : vector<8x64xf32>
    %c8_i32_46 = arith.constant 8 : i32
    %c0_47 = arith.constant 0 : index
    %c0_48 = arith.constant 0 : index
    %215 = vector.load %arg10[%c0_47, %c0_48] : memref<8x64xf32, #tpu.memory_space<vmem>>, vector<8x64xf32>
    tpu.vector_store %arg10[%c0_47, %c0_48], %214 {strides = array<i32>} : memref<8x64xf32, #tpu.memory_space<vmem>>, vector<8x64xf32>,
    %c0_i32_49 = arith.constant 0 : i32
    %216 = arith.cmpi eq, %arg1, %c0_i32_49 : i32
    %217 = arith.extui %216 : i1 to i32
    %c0_i32_50 = arith.constant 0 : i32
    %218 = arith.cmpi ne, %217, %c0_i32_50 : i32
    scf.if %218 {
      %c0_51 = arith.constant 0 : index
      %c0_52 = arith.constant 0 : index
      %219 = vector.load %arg10[%c0_51, %c0_52] : memref<8x64xf32, #tpu.memory_space<vmem>>, vector<8x64xf32>
      %c0_53 = arith.constant 0 : index
      %c0_54 = arith.constant 0 : index
      %220 = vector.load %arg7[%c0_53, %c0_54] : memref<1x64xf32, #tpu.memory_space<vmem>>, vector<1x64xf32>
      %221 = vector.broadcast %220 : vector<1x64xf32> to vector<8x64xf32>
      %222 = arith.mulf %219, %221 : vector<8x64xf32>
      %cst_55 = arith.constant dense<0.000000e+00> : vector<8xf32>
      %223 = vector.multi_reduction <add>, %222, %cst_55 [1] : vector<8x64xf32> to vector<8xf32>
      %224 = vector.shape_cast %223 : vector<8xf32> to vector<8x1xf32>
      %c0_56 = arith.constant 0 : index
      %c0_57 = arith.constant 0 : index
      %225 = vector.load %arg8[%c0_56, %c0_57] : memref<1x1xf32, #tpu.memory_space<vmem>>, vector<1x1xf32>
      %226 = vector.broadcast %225 : vector<1x1xf32> to vector<8x1xf32>
      %227 = arith.addf %224, %226 : vector<8x1xf32>
      %228 = arith.negf %227 : vector<8x1xf32>
      %229 = math.exp %228 : vector<8x1xf32>
      %cst_58 = arith.constant 1.000000e+00 : f32
      %230 = vector.broadcast %cst_58 : f32 to vector<8x1xf32>
      %231 = arith.addf %230, %229 : vector<8x1xf32>
      %232 = arith.divf %230, %231 : vector<8x1xf32>
      %c0_59 = arith.constant 0 : index
      %c0_60 = arith.constant 0 : index
      %233 = vector.load %arg9[%c0_59, %c0_60] : memref<8x1xf32, #tpu.memory_space<vmem>>, vector<8x1xf32>
      tpu.vector_store %arg9[%c0_59, %c0_60], %232 {strides = array<i32>} : memref<8x1xf32, #tpu.memory_space<vmem>>, vector<8x1xf32>,
    } else {
    }
    return
  }
  func.func @transform_0(%arg0: i32, %arg1: i32) -> (i32, i32) {
    %c1_i32 = arith.constant 1 : i32
    %0 = arith.muli %arg0, %c1_i32 : i32
    %1 = arith.addi %0, %arg1 : i32
    %c0_i32 = arith.constant 0 : i32
    %c0_i32_0 = arith.constant 0 : i32
    return %1, %c0_i32 : i32, i32
  }
  func.func @transform_1(%arg0: i32, %arg1: i32) -> (i32, i32) {
    %c0_i32 = arith.constant 0 : i32
    %c0_i32_0 = arith.constant 0 : i32
    %c0_i32_1 = arith.constant 0 : i32
    return %c0_i32, %c0_i32_0 : i32, i32
  }
  func.func @transform_2(%arg0: i32, %arg1: i32) -> (i32, i32) {
    %c0_i32 = arith.constant 0 : i32
    %c0_i32_0 = arith.constant 0 : i32
    %c0_i32_1 = arith.constant 0 : i32
    return %c0_i32, %c0_i32_0 : i32, i32
  }
  func.func @transform_3(%arg0: i32, %arg1: i32) -> (i32, i32) {
    %c0_i32 = arith.constant 0 : i32
    %c0_i32_0 = arith.constant 0 : i32
    %c0_i32_1 = arith.constant 0 : i32
    return %c0_i32, %c0_i32_0 : i32, i32
  }
  func.func @transform_4(%arg0: i32, %arg1: i32) -> (i32, i32) {
    %c0_i32 = arith.constant 0 : i32
    %c0_i32_0 = arith.constant 0 : i32
    %c0_i32_1 = arith.constant 0 : i32
    return %c0_i32, %c0_i32_0 : i32, i32
  }
  func.func @transform_5(%arg0: i32, %arg1: i32) -> (i32, i32) {
    %c0_i32 = arith.constant 0 : i32
    %c0_i32_0 = arith.constant 0 : i32
    %c0_i32_1 = arith.constant 0 : i32
    return %c0_i32, %c0_i32_0 : i32, i32
  }
  func.func @transform_6(%arg0: i32, %arg1: i32) -> (i32, i32) {
    %c0_i32 = arith.constant 0 : i32
    %c0_i32_0 = arith.constant 0 : i32
    %c0_i32_1 = arith.constant 0 : i32
    return %c0_i32, %c0_i32_0 : i32, i32
  }
  func.func @transform_7(%arg0: i32, %arg1: i32) -> (i32, i32) {
    %c0_i32 = arith.constant 0 : i32
    %c0_i32_0 = arith.constant 0 : i32
    return %arg0, %c0_i32 : i32, i32
  }
}

</mosaic_0001>

<llo_original>
// kernel: net_forward.1
$region0: #{net_forward.1}
  #allocation0 [shape = 'u32[]', space=smem, size = 0x4, offset = 0x4, fixed_abs, tag = 'smem constant byte address 0x4 - core index']
  #allocation1 [shape = 'u32[144,128]{1,0:T(1,128)}', space=vmem, size = 0x12000, scoped, tag = 'internal scratch']
  #allocation2 [shape = 'f32[8,64]{1,0:T(8,128)}', space=vmem, size = 0x1000, scoped, tag = 'scratch operand']
  #allocation3 [shape = 'f32[64,192]{1,0:T(8,128)}', space=vmem, size = 0x10000, scoped, tag = 'scratch operand']
  #allocation4 [shape = 'f32[1,1]{1,0:T(1,128)S(1)}', space=vmem, size = 0x200, scoped, tag = 'scoped memory for net_forward.1']
  %s0 = inlined_call_operand.vmem [shape: bf16[64,66], index: 0, kind: input, shape index: {}]
  %s1 = inlined_call_operand.vmem [shape: bf16[66,192], index: 1, kind: input, shape index: {}]
  %s2 = inlined_call_operand.vmem [shape: bf16[64,192], index: 2, kind: input, shape index: {}]
  %s3 = inlined_call_operand.vmem [shape: f32[1,192], index: 3, kind: input, shape index: {}]
  %s4 = inlined_call_operand.vmem [shape: f32[1,64], index: 4, kind: input, shape index: {}]
  %s5 = inlined_call_operand.vmem [shape: f32[1,64], index: 5, kind: input, shape index: {}]
  %s6 = inlined_call_operand.<no memory space> [shape: f32[1,1], index: 6, kind: input, shape index: {}]
  %s7 = inlined_call_operand.vmem [shape: f32[8,1], index: 7, kind: output, shape index: {}]
  %s8 = sld [smem:[#allocation0]]
  $region46: #{net_forward.1} parent=0
    _
  %s10 = ssub.s32 1, %s8
  %s11 = scalar_select 0, %s10, %s8
  %v12 = vstv %s6
  %13 = vst [vmem:[#allocation4] sm:$0x1] %v12
  // Predicated region
  $region2: #{net_forward.1} parent=0 // pred_check
    _
  $region3: #{net_forward.1} parent=0 // pred_check_branch
    %15 = sbr.rel (0) target = $region5
  $region4: #{net_forward.1} parent=0 // pred_region
    %s16 = sadd.s32 0, 0
    %s17 = smul.u32 8, %s16
    %p18 = scmp.lt.s32.totalorder %s17, 7
    %s19 = scalar_select %p18, %s17, 7
    %s20 = smul.addr %s19, 4
    %s21 = scalar_lea.vmem %s0, %s20
    %s22 = sadd.s32 0, 0
    %s23 = smul.u32 8, %s22
  $region5: #{net_forward.1} parent=0 // pred_fallthru
    _
  // Predicated region
  $region6: #{net_forward.1} parent=0 // pred_check
    _
  $region7: #{net_forward.1} parent=0 // pred_check_branch
    %25 = sbr.rel (0) target = $region9
  $region8: #{net_forward.1} parent=0 // pred_region
    _
  $region9: #{net_forward.1} parent=0 // pred_fallthru
    _
  // Predicated region
  $region10: #{net_forward.1} parent=0 // pred_check
    _
  $region11: #{net_forward.1} parent=0 // pred_check_branch
    %27 = sbr.rel (0) target = $region13
  $region12: #{net_forward.1} parent=0 // pred_region
    _
  $region13: #{net_forward.1} parent=0 // pred_fallthru
    _
  // Predicated region
  $region14: #{net_forward.1} parent=0 // pred_check
    _
  $region15: #{net_forward.1} parent=0 // pred_check_branch
    %29 = sbr.rel (0) target = $region17
  $region16: #{net_forward.1} parent=0 // pred_region
    _
  $region17: #{net_forward.1} parent=0 // pred_fallthru
    _
  // Predicated region
  $region18: #{net_forward.1} parent=0 // pred_check
    _
  $region19: #{net_forward.1} parent=0 // pred_check_branch
    %31 = sbr.rel (0) target = $region21
  $region20: #{net_forward.1} parent=0 // pred_region
    _
  $region21: #{net_forward.1} parent=0 // pred_fallthru
    _
  // Predicated region
  $region22: #{net_forward.1} parent=0 // pred_check
    _
  $region23: #{net_forward.1} parent=0 // pred_check_branch
    %33 = sbr.rel (0) target = $region25
  $region24: #{net_forward.1} parent=0 // pred_region
    _
  $region25: #{net_forward.1} parent=0 // pred_fallthru
    _
  // Predicated region
  $region26: #{net_forward.1} parent=0 // pred_check
    _
  $region27: #{net_forward.1} parent=0 // pred_check_branch
    %35 = sbr.rel (0) target = $region29
  $region28: #{net_forward.1} parent=0 // pred_region
    _
  $region29: #{net_forward.1} parent=0 // pred_fallthru
    _
  %s36 = sadd.s32 0, 0
  %s37 = smul.u32 8, %s36
  %p38 = scmp.lt.s32.totalorder %s37, 7
  %s39 = scalar_select %p38, %s37, 7
  %s40 = smul.addr %s39, 4
  %s41 = scalar_lea.vmem %s0, %s40
  %s42 = sadd.s32 0, 0
  %s43 = smul.u32 8, %s42
  %p44 = scmp.lt.s32.totalorder %s43, 7
  %s45 = scalar_select %p44, %s43, 7
  %s46 = smul.addr %s45, 4
  %s47 = scalar_lea.vmem %s0, %s46
  %s48 = sadd.s32 0, 0
  %s49 = smul.u32 8, %s48
  %p51 = scmp.eq.s32.totalorder 0, 0
  // Predicated region
  $region30: #{net_forward.1} parent=0 // pred_check
    %p52 = pneg %p51
  $region31: #{net_forward.1} parent=0 // pred_check_branch
    %54 = sbr.rel (%p52) target = $region33
  $region32: #{net_forward.1} parent=0 // pred_region
    %vm55 = vcmask 523264
    %56 = vst.msk [vmem:[#allocation2] sm:$0xff] %vm55, 0.0
  $region33: #{net_forward.1} parent=0 // pred_fallthru
    _
  %v57 = vld [vmem:[%s47] sm:$0xf]
  %v58 = vld [vmem:[%s47 + $0x4] sm:$0xf]
  %v59 = vld [vmem:[%s47 + $0x8] sm:$0xf]
  %v60 = vld [vmem:[%s47 + $0xc] sm:$0xf]
  %v61 = vld [vmem:[%s47 + $0x10] sm:$0xf]
  %v62 = vld [vmem:[%s47 + $0x14] sm:$0xf]
  %v63 = vld [vmem:[%s47 + $0x18] sm:$0xf]
  %v64 = vld [vmem:[%s47 + $0x1c] sm:$0xf]
  %v65 = vld [vmem:[%s1] sm:$0xff]
  %v66 = vld [vmem:[%s1 + $0x8] sm:$0xff]
  %v67 = vld [vmem:[%s1 + $0x10] sm:$0xff]
  %v68 = vld [vmem:[%s1 + $0x18] sm:$0xff]
  %v69 = vld [vmem:[%s1 + $0x20] sm:$0xff]
  %v70 = vld [vmem:[%s1 + $0x28] sm:$0xff]
  %v71 = vld [vmem:[%s1 + $0x30] sm:$0xff]
  %v72 = vld [vmem:[%s1 + $0x38] sm:$0xff]
  %v73 = vld [vmem:[%s1 + $0x40] sm:$0x11]
  %v74 = vld [vmem:[%s3] sm:$0x3]
  %v76 = vlaneseq
  %v77 = vshrl.u32 %v76, 7
  %v78 = vsub.s32 0, %v77
  %v79 = vrot.slane %v74, %v78
  %v80 = vlaneseq
  %v81 = vshrl.u32 %v80, 7
  %v82 = vsub.s32 1, %v81
  %v83 = vrot.slane %v74, %v82
  %v94 = vunpack.c.l.b16 %v57
  %v95 = vunpack.c.l.b16 %v58
  %v96 = vunpack.c.l.b16 %v59
  %v97 = vunpack.c.l.b16 %v60
  %v98 = vunpack.c.l.b16 %v61
  %v99 = vunpack.c.l.b16 %v62
  %v100 = vunpack.c.l.b16 %v63
  %v101 = vunpack.c.l.b16 %v64
  %v102 = vpack.c.b16 %v95, %v94
  %v103 = vpack.c.b16 %v97, %v96
  %v104 = vpack.c.b16 %v99, %v98
  %v105 = vpack.c.b16 %v101, %v100
  %v115 = vunpack.c.l.b16 %v65
  %v116 = vunpack.c.h.b16 %v65
  %v117 = vunpack.c.l.b16 %v66
  %v118 = vunpack.c.h.b16 %v66
  %v119 = vunpack.c.l.b16 %v67
  %v120 = vunpack.c.h.b16 %v67
  %v121 = vunpack.c.l.b16 %v68
  %v122 = vunpack.c.h.b16 %v68
  %v123 = vunpack.c.l.b16 %v69
  %v124 = vunpack.c.h.b16 %v69
  %v125 = vunpack.c.l.b16 %v70
  %v126 = vunpack.c.h.b16 %v70
  %v127 = vunpack.c.l.b16 %v71
  %v128 = vunpack.c.h.b16 %v71
  %v129 = vunpack.c.l.b16 %v72
  %v130 = vunpack.c.h.b16 %v72
  %v131 = vunpack.c.l.b16 %v73
  %v132 = vunpack.c.h.b16 %v73
  %v133 = vpack.c.b16 %v117, %v115
  %v134 = vpack.c.b16 %v118, %v116
  %v135 = vpack.c.b16 %v121, %v119
  %v136 = vpack.c.b16 %v122, %v120
  %v137 = vpack.c.b16 %v125, %v123
  %v138 = vpack.c.b16 %v126, %v124
  %v139 = vpack.c.b16 %v129, %v127
  %v140 = vpack.c.b16 %v130, %v128
  %v141 = vpack.c.b16 %v131, %v131
  %v142 = vpack.c.b16 %v132, %v132
  %vm151 = vcmask 539648
  %v153 = vsel %vm151, %v102, 0
  %v156 = vsel %vm151, %v103, 0
  %v159 = vsel %vm151, %v104, 0
  %v162 = vsel %vm151, %v105, 0
  %vm164 = vcmask 1040384
  %v166 = vsel %vm164, %v141, 0
  %v169 = vsel %vm164, %v142, 0
  %171 = vmatprep.subr.bf16.mxu0 %v134
  %172 = vmatpush1.bf16.msra.mxu0 %v133
  %173 = vmatprep.subr.bf16.mxu0 %v136
  %174 = vmatpush1.bf16.msra.mxu0 %v135
  %175 = vmatprep.subr.bf16.mxu0 %v138
  %176 = vmatpush1.bf16.msra.mxu0 %v137
  %177 = vmatprep.subr.bf16.mxu0 %v140
  %178 = vmatpush1.bf16.msra.mxu0 %v139
  %179 = vmatprep.subr.bf16.mxu0 %v169
  %180 = vmatpush1.bf16.msra.mxu0 %v166
  %181 = vmatprep.subr.bf16.mxu0 0
  %182 = vmatpush1.bf16.msra.mxu0 0
  %183 = vmatprep.subr.bf16.mxu0 0
  %184 = vmatpush1.bf16.msra.mxu0 0
  %185 = vmatprep.subr.bf16.mxu0 0
  %186 = vmatpush1.bf16.msra.mxu0 0
  %187 = vmatprep.subr.bf16.mxu0 0
  %188 = vmatpush1.bf16.msra.mxu0 0
  %189 = vmatprep.subr.bf16.mxu0 0
  %190 = vmatpush1.bf16.msra.mxu0 0
  %191 = vmatprep.subr.bf16.mxu0 0
  %192 = vmatpush1.bf16.msra.mxu0 0
  %193 = vmatprep.subr.bf16.mxu0 0
  %194 = vmatpush1.bf16.msra.mxu0 0
  %195 = vmatprep.subr.bf16.mxu0 0
  %196 = vmatpush1.bf16.msra.mxu0 0
  %197 = vmatprep.subr.bf16.mxu0 0
  %198 = vmatpush1.bf16.msra.mxu0 0
  %199 = vmatprep.subr.bf16.mxu0 0
  %200 = vmatpush1.bf16.msra.mxu0 0
  %201 = vmatprep.subr.bf16.mxu0 0
  %202 = vmatpush1.bf16.msra.mxu0 0
  %203 = vmatprep.mubr.bf16.mxu0 0
  %204 = vmatmul.mubr.bf16.gmra.mrb[0].mxu0 %v153
  %v205 = vpop.f32.mrb[0].mxu0
  %v206 = vadd.f32 %v79, %v205
  %v207 = vpop.f32.mrb[0].mxu0
  %v208 = vadd.f32 %v83, %v207
  %v209 = vpop.f32.mrb[0].mxu0
  %v210 = vadd.f32 %v79, %v209
  %v211 = vpop.f32.mrb[0].mxu0
  %v212 = vadd.f32 %v83, %v211
  %213 = vmatprep.mubr.bf16.mxu0 0
  %214 = vmatmul.mubr.bf16.gmra.mrb[0].mxu0 %v156
  %v215 = vpop.f32.mrb[0].mxu0
  %v216 = vadd.f32 %v79, %v215
  %v217 = vpop.f32.mrb[0].mxu0
  %v218 = vadd.f32 %v83, %v217
  %v219 = vpop.f32.mrb[0].mxu0
  %v220 = vadd.f32 %v79, %v219
  %v221 = vpop.f32.mrb[0].mxu0
  %v222 = vadd.f32 %v83, %v221
  %223 = vmatprep.mubr.bf16.mxu0 0
  %224 = vmatmul.mubr.bf16.gmra.mrb[0].mxu0 %v159
  %v225 = vpop.f32.mrb[0].mxu0
  %v226 = vadd.f32 %v79, %v225
  %v227 = vpop.f32.mrb[0].mxu0
  %v228 = vadd.f32 %v83, %v227
  %v229 = vpop.f32.mrb[0].mxu0
  %v230 = vadd.f32 %v79, %v229
  %v231 = vpop.f32.mrb[0].mxu0
  %v232 = vadd.f32 %v83, %v231
  %233 = vmatprep.mubr.bf16.mxu0 0
  %234 = vmatmul.mubr.bf16.gmra.mrb[0].mxu0 %v162
  %v235 = vpop.f32.mrb[0].mxu0
  %v236 = vadd.f32 %v79, %v235
  %v237 = vpop.f32.mrb[0].mxu0
  %v238 = vadd.f32 %v83, %v237
  %v239 = vpop.f32.mrb[0].mxu0
  %v240 = vadd.f32 %v79, %v239
  %v241 = vpop.f32.mrb[0].mxu0
  %v242 = vadd.f32 %v83, %v241
  %243 = vdwg.mxu0
  %244 = vst [vmem:[#allocation3] sm:$0xff] %v206
  %vm245 = vcmask 523264
  %246 = vst.msk [vmem:[#allocation3 + $0x8] sm:$0xff] %vm245, %v208
  %247 = vst [vmem:[#allocation3 + $0x10] sm:$0xff] %v210
  %248 = vst.msk [vmem:[#allocation3 + $0x18] sm:$0xff] %vm245, %v212
  %249 = vst [vmem:[#allocation3 + $0x20] sm:$0xff] %v216
  %250 = vst.msk [vmem:[#allocation3 + $0x28] sm:$0xff] %vm245, %v218
  %251 = vst [vmem:[#allocation3 + $0x30] sm:$0xff] %v220
  %252 = vst.msk [vmem:[#allocation3 + $0x38] sm:$0xff] %vm245, %v222
  %253 = vst [vmem:[#allocation3 + $0x40] sm:$0xff] %v226
  %254 = vst.msk [vmem:[#allocation3 + $0x48] sm:$0xff] %vm245, %v228
  %255 = vst [vmem:[#allocation3 + $0x50] sm:$0xff] %v230
  %256 = vst.msk [vmem:[#allocation3 + $0x58] sm:$0xff] %vm245, %v232
  %257 = vst [vmem:[#allocation3 + $0x60] sm:$0xff] %v236
  %258 = vst.msk [vmem:[#allocation3 + $0x68] sm:$0xff] %vm245, %v238
  %259 = vst [vmem:[#allocation3 + $0x70] sm:$0xff] %v240
  %260 = vst.msk [vmem:[#allocation3 + $0x78] sm:$0xff] %vm245, %v242
  %v261 = vld [vmem:[%s2] sm:$0xff]
  %v262 = vld [vmem:[%s2 + $0x8] sm:$0xff]
  %v263 = vld [vmem:[%s2 + $0x10] sm:$0xff]
  %v264 = vld [vmem:[%s2 + $0x18] sm:$0xff]
  %v265 = vld [vmem:[%s2 + $0x20] sm:$0xff]
  %v266 = vld [vmem:[%s2 + $0x28] sm:$0xff]
  %v267 = vld [vmem:[%s2 + $0x30] sm:$0xff]
  %v268 = vld [vmem:[%s2 + $0x38] sm:$0xff]
  %v269 = vld [vmem:[%s4] sm:$0x1]
  %v271 = vlaneseq
  %v272 = vshrl.u32 %v271, 7
  %v273 = vsub.s32 0, %v272
  %v274 = vrot.slane %v269, %v273
  %v276 = vld [vmem:[#allocation2] sm:$0xff]
  %s277 = smul.u32 0, 2
  %s278 = smul.addr %s277, 8
  %s279 = scalar_lea.vmem [#allocation3], %s278
  %v280 = vld [vmem:[%s279] sm:$0xff]
  %v281 = vld [vmem:[%s279 + $0x8] sm:$0xff]
  %v282 = vpack.c.bf16 %v276, %v276
  %v291 = vunpack.c.l.b16 %v261
  %v292 = vunpack.c.h.b16 %v261
  %v293 = vunpack.c.l.b16 %v262
  %v294 = vunpack.c.h.b16 %v262
  %v295 = vunpack.c.l.b16 %v263
  %v296 = vunpack.c.h.b16 %v263
  %v297 = vunpack.c.l.b16 %v264
  %v298 = vunpack.c.h.b16 %v264
  %v299 = vunpack.c.l.b16 %v265
  %v300 = vunpack.c.h.b16 %v265
  %v301 = vunpack.c.l.b16 %v266
  %v302 = vunpack.c.h.b16 %v266
  %v303 = vunpack.c.l.b16 %v267
  %v304 = vunpack.c.h.b16 %v267
  %v305 = vunpack.c.l.b16 %v268
  %v306 = vunpack.c.h.b16 %v268
  %v307 = vpack.c.b16 %v293, %v291
  %v308 = vpack.c.b16 %v294, %v292
  %v309 = vpack.c.b16 %v297, %v295
  %v310 = vpack.c.b16 %v298, %v296
  %v311 = vpack.c.b16 %v301, %v299
  %v312 = vpack.c.b16 %v302, %v300
  %v313 = vpack.c.b16 %v305, %v303
  %v314 = vpack.c.b16 %v306, %v304
  %v324 = vsel %vm245, %v282, 0
  %326 = vmatprep.subr.bf16.mxu0 %v308
  %327 = vmatpush1.bf16.msra.mxu0 %v307
  %328 = vmatprep.subr.bf16.mxu0 %v310
  %329 = vmatpush1.bf16.msra.mxu0 %v309
  %330 = vmatprep.subr.bf16.mxu0 %v312
  %331 = vmatpush1.bf16.msra.mxu0 %v311
  %332 = vmatprep.subr.bf16.mxu0 %v314
  %333 = vmatpush1.bf16.msra.mxu0 %v313
  %334 = vmatprep.subr.bf16.mxu0 0
  %335 = vmatpush1.bf16.msra.mxu0 0
  %336 = vmatprep.subr.bf16.mxu0 0
  %337 = vmatpush1.bf16.msra.mxu0 0
  %338 = vmatprep.subr.bf16.mxu0 0
  %339 = vmatpush1.bf16.msra.mxu0 0
  %340 = vmatprep.subr.bf16.mxu0 0
  %341 = vmatpush1.bf16.msra.mxu0 0
  %342 = vmatprep.subr.bf16.mxu0 0
  %343 = vmatpush1.bf16.msra.mxu0 0
  %344 = vmatprep.subr.bf16.mxu0 0
  %345 = vmatpush1.bf16.msra.mxu0 0
  %346 = vmatprep.subr.bf16.mxu0 0
  %347 = vmatpush1.bf16.msra.mxu0 0
  %348 = vmatprep.subr.bf16.mxu0 0
  %349 = vmatpush1.bf16.msra.mxu0 0
  %350 = vmatprep.subr.bf16.mxu0 0
  %351 = vmatpush1.bf16.msra.mxu0 0
  %352 = vmatprep.subr.bf16.mxu0 0
  %353 = vmatpush1.bf16.msra.mxu0 0
  %354 = vmatprep.subr.bf16.mxu0 0
  %355 = vmatpush1.bf16.msra.mxu0 0
  %356 = vmatprep.subr.bf16.mxu0 0
  %357 = vmatpush1.bf16.msra.mxu0 0
  %358 = vmatprep.mubr.bf16.mxu0 0
  %359 = vmatmul.mubr.bf16.gmra.mrb[0].mxu0 %v324
  %v360 = vpop.f32.mrb[0].mxu0
  %v361 = vadd.f32 0.0, %v360
  %v362 = vpop.f32.mrb[0].mxu0
  %v363 = vadd.f32 0.0, %v362
  %v364 = vpop.f32.mrb[0].mxu0
  %v365 = vpop.f32.mrb[0].mxu0
  %366 = vdwg.mxu0
  %v367 = vadd.f32 %v280, %v361
  %v368 = vxor.u32 %v367, 2147483648
  %v369 = vmul.f32 %v368, 1.442695
  %v370 = vpow.pop %v369
  %v371 = vadd.f32 %v370, 1.0
  %v372 = vrcp.pop %v371
  %v373 = vmul.f32 1.0, %v372
  %v374 = vadd.f32 %v363, %v274
  %v375 = vmul.f32 %v373, %v374
  %v376 = vadd.f32 %v281, %v375
  %v377 = vtanh.pop %v376
  %v378 = vsub.f32 %v276, %v377
  %380 = vrot.lane.b32.xlu0 %v378, 64
  %v381 = vpop.permute.xlu0 %380
  %v383 = vmul.f32 %v373, %v381
  %385 = vrot.lane.b32.xlu0 %v383, 64
  %v386 = vpop.permute.xlu0 %385
  %v388 = vadd.f32 %v377, %v386
  %s389 = smul.u32 1, 2
  %s390 = smul.addr %s389, 8
  %s391 = scalar_lea.vmem [#allocation3], %s390
  %v392 = vld [vmem:[%s391] sm:$0xff]
  %v393 = vld [vmem:[%s391 + $0x8] sm:$0xff]
  %v394 = vpack.c.bf16 %v388, %v388
  %v396 = vsel %vm245, %v394, 0
  %398 = vmatprep.subr.bf16.mxu0 %v308
  %399 = vmatpush1.bf16.msra.mxu0 %v307
  %400 = vmatprep.subr.bf16.mxu0 %v310
  %401 = vmatpush1.bf16.msra.mxu0 %v309
  %402 = vmatprep.subr.bf16.mxu0 %v312
  %403 = vmatpush1.bf16.msra.mxu0 %v311
  %404 = vmatprep.subr.bf16.mxu0 %v314
  %405 = vmatpush1.bf16.msra.mxu0 %v313
  %406 = vmatprep.subr.bf16.mxu0 0
  %407 = vmatpush1.bf16.msra.mxu0 0
  %408 = vmatprep.subr.bf16.mxu0 0
  %409 = vmatpush1.bf16.msra.mxu0 0
  %410 = vmatprep.subr.bf16.mxu0 0
  %411 = vmatpush1.bf16.msra.mxu0 0
  %412 = vmatprep.subr.bf16.mxu0 0
  %413 = vmatpush1.bf16.msra.mxu0 0
  %414 = vmatprep.subr.bf16.mxu0 0
  %415 = vmatpush1.bf16.msra.mxu0 0
  %416 = vmatprep.subr.bf16.mxu0 0
  %417 = vmatpush1.bf16.msra.mxu0 0
  %418 = vmatprep.subr.bf16.mxu0 0
  %419 = vmatpush1.bf16.msra.mxu0 0
  %420 = vmatprep.subr.bf16.mxu0 0
  %421 = vmatpush1.bf16.msra.mxu0 0
  %422 = vmatprep.subr.bf16.mxu0 0
  %423 = vmatpush1.bf16.msra.mxu0 0
  %424 = vmatprep.subr.bf16.mxu0 0
  %425 = vmatpush1.bf16.msra.mxu0 0
  %426 = vmatprep.subr.bf16.mxu0 0
  %427 = vmatpush1.bf16.msra.mxu0 0
  %428 = vmatprep.subr.bf16.mxu0 0
  %429 = vmatpush1.bf16.msra.mxu0 0
  %430 = vmatprep.mubr.bf16.mxu0 0
  %431 = vmatmul.mubr.bf16.gmra.mrb[0].mxu0 %v396
  %v432 = vpop.f32.mrb[0].mxu0
  %v433 = vadd.f32 0.0, %v432
  %v434 = vpop.f32.mrb[0].mxu0
  %v435 = vadd.f32 0.0, %v434
  %v436 = vpop.f32.mrb[0].mxu0
  %v437 = vpop.f32.mrb[0].mxu0
  %438 = vdwg.mxu0
  %v439 = vadd.f32 %v392, %v433
  %v440 = vxor.u32 %v439, 2147483648
  %v441 = vmul.f32 %v440, 1.442695
  %v442 = vpow.pop %v441
  %v443 = vadd.f32 %v442, 1.0
  %v444 = vrcp.pop %v443
  %v445 = vmul.f32 1.0, %v444
  %v446 = vadd.f32 %v435, %v274
  %v447 = vmul.f32 %v445, %v446
  %v448 = vadd.f32 %v393, %v447
  %v449 = vtanh.pop %v448
  %v450 = vsub.f32 %v388, %v449
  %452 = vrot.lane.b32.xlu0 %v450, 64
  %v453 = vpop.permute.xlu0 %452
  %v455 = vmul.f32 %v445, %v453
  %457 = vrot.lane.b32.xlu0 %v455, 64
  %v458 = vpop.permute.xlu0 %457
  %v460 = vadd.f32 %v449, %v458
  %s461 = smul.u32 2, 2
  %s462 = smul.addr %s461, 8
  %s463 = scalar_lea.vmem [#allocation3], %s462
  %v464 = vld [vmem:[%s463] sm:$0xff]
  %v465 = vld [vmem:[%s463 + $0x8] sm:$0xff]
  %v466 = vpack.c.bf16 %v460, %v460
  %v468 = vsel %vm245, %v466, 0
  %470 = vmatprep.subr.bf16.mxu0 %v308
  %471 = vmatpush1.bf16.msra.mxu0 %v307
  %472 = vmatprep.subr.bf16.mxu0 %v310
  %473 = vmatpush1.bf16.msra.mxu0 %v309
  %474 = vmatprep.subr.bf16.mxu0 %v312
  %475 = vmatpush1.bf16.msra.mxu0 %v311
  %476 = vmatprep.subr.bf16.mxu0 %v314
  %477 = vmatpush1.bf16.msra.mxu0 %v313
  %478 = vmatprep.subr.bf16.mxu0 0
  %479 = vmatpush1.bf16.msra.mxu0 0
  %480 = vmatprep.subr.bf16.mxu0 0
  %481 = vmatpush1.bf16.msra.mxu0 0
  %482 = vmatprep.subr.bf16.mxu0 0
  %483 = vmatpush1.bf16.msra.mxu0 0
  %484 = vmatprep.subr.bf16.mxu0 0
  %485 = vmatpush1.bf16.msra.mxu0 0
  %486 = vmatprep.subr.bf16.mxu0 0
  %487 = vmatpush1.bf16.msra.mxu0 0
  %488 = vmatprep.subr.bf16.mxu0 0
  %489 = vmatpush1.bf16.msra.mxu0 0
  %490 = vmatprep.subr.bf16.mxu0 0
  %491 = vmatpush1.bf16.msra.mxu0 0
  %492 = vmatprep.subr.bf16.mxu0 0
  %493 = vmatpush1.bf16.msra.mxu0 0
  %494 = vmatprep.subr.bf16.mxu0 0
  %495 = vmatpush1.bf16.msra.mxu0 0
  %496 = vmatprep.subr.bf16.mxu0 0
  %497 = vmatpush1.bf16.msra.mxu0 0
  %498 = vmatprep.subr.bf16.mxu0 0
  %499 = vmatpush1.bf16.msra.mxu0 0
  %500 = vmatprep.subr.bf16.mxu0 0
  %501 = vmatpush1.bf16.msra.mxu0 0
  %502 = vmatprep.mubr.bf16.mxu0 0
  %503 = vmatmul.mubr.bf16.gmra.mrb[0].mxu0 %v468
  %v504 = vpop.f32.mrb[0].mxu0
  %v505 = vadd.f32 0.0, %v504
  %v506 = vpop.f32.mrb[0].mxu0
  %v507 = vadd.f32 0.0, %v506
  %v508 = vpop.f32.mrb[0].mxu0
  %v509 = vpop.f32.mrb[0].mxu0
  %510 = vdwg.mxu0
  %v511 = vadd.f32 %v464, %v505
  %v512 = vxor.u32 %v511, 2147483648
  %v513 = vmul.f32 %v512, 1.442695
  %v514 = vpow.pop %v513
  %v515 = vadd.f32 %v514, 1.0
  %v516 = vrcp.pop %v515
  %v517 = vmul.f32 1.0, %v516
  %v518 = vadd.f32 %v507, %v274
  %v519 = vmul.f32 %v517, %v518
  %v520 = vadd.f32 %v465, %v519
  %v521 = vtanh.pop %v520
  %v522 = vsub.f32 %v460, %v521
  %524 = vrot.lane.b32.xlu0 %v522, 64
  %v525 = vpop.permute.xlu0 %524
  %v527 = vmul.f32 %v517, %v525
  %529 = vrot.lane.b32.xlu0 %v527, 64
  %v530 = vpop.permute.xlu0 %529
  %v532 = vadd.f32 %v521, %v530
  %s533 = smul.u32 3, 2
  %s534 = smul.addr %s533, 8
  %s535 = scalar_lea.vmem [#allocation3], %s534
  %v536 = vld [vmem:[%s535] sm:$0xff]
  %v537 = vld [vmem:[%s535 + $0x8] sm:$0xff]
  %v538 = vpack.c.bf16 %v532, %v532
  %v540 = vsel %vm245, %v538, 0
  %542 = vmatprep.subr.bf16.mxu0 %v308
  %543 = vmatpush1.bf16.msra.mxu0 %v307
  %544 = vmatprep.subr.bf16.mxu0 %v310
  %545 = vmatpush1.bf16.msra.mxu0 %v309
  %546 = vmatprep.subr.bf16.mxu0 %v312
  %547 = vmatpush1.bf16.msra.mxu0 %v311
  %548 = vmatprep.subr.bf16.mxu0 %v314
  %549 = vmatpush1.bf16.msra.mxu0 %v313
  %550 = vmatprep.subr.bf16.mxu0 0
  %551 = vmatpush1.bf16.msra.mxu0 0
  %552 = vmatprep.subr.bf16.mxu0 0
  %553 = vmatpush1.bf16.msra.mxu0 0
  %554 = vmatprep.subr.bf16.mxu0 0
  %555 = vmatpush1.bf16.msra.mxu0 0
  %556 = vmatprep.subr.bf16.mxu0 0
  %557 = vmatpush1.bf16.msra.mxu0 0
  %558 = vmatprep.subr.bf16.mxu0 0
  %559 = vmatpush1.bf16.msra.mxu0 0
  %560 = vmatprep.subr.bf16.mxu0 0
  %561 = vmatpush1.bf16.msra.mxu0 0
  %562 = vmatprep.subr.bf16.mxu0 0
  %563 = vmatpush1.bf16.msra.mxu0 0
  %564 = vmatprep.subr.bf16.mxu0 0
  %565 = vmatpush1.bf16.msra.mxu0 0
  %566 = vmatprep.subr.bf16.mxu0 0
  %567 = vmatpush1.bf16.msra.mxu0 0
  %568 = vmatprep.subr.bf16.mxu0 0
  %569 = vmatpush1.bf16.msra.mxu0 0
  %570 = vmatprep.subr.bf16.mxu0 0
  %571 = vmatpush1.bf16.msra.mxu0 0
  %572 = vmatprep.subr.bf16.mxu0 0
  %573 = vmatpush1.bf16.msra.mxu0 0
  %574 = vmatprep.mubr.bf16.mxu0 0
  %575 = vmatmul.mubr.bf16.gmra.mrb[0].mxu0 %v540
  %v576 = vpop.f32.mrb[0].mxu0
  %v577 = vadd.f32 0.0, %v576
  %v578 = vpop.f32.mrb[0].mxu0
  %v579 = vadd.f32 0.0, %v578
  %v580 = vpop.f32.mrb[0].mxu0
  %v581 = vpop.f32.mrb[0].mxu0
  %582 = vdwg.mxu0
  %v583 = vadd.f32 %v536, %v577
  %v584 = vxor.u32 %v583, 2147483648
  %v585 = vmul.f32 %v584, 1.442695
  %v586 = vpow.pop %v585
  %v587 = vadd.f32 %v586, 1.0
  %v588 = vrcp.pop %v587
  %v589 = vmul.f32 1.0, %v588
  %v590 = vadd.f32 %v579, %v274
  %v591 = vmul.f32 %v589, %v590
  %v592 = vadd.f32 %v537, %v591
  %v593 = vtanh.pop %v592
  %v594 = vsub.f32 %v532, %v593
  %596 = vrot.lane.b32.xlu0 %v594, 64
  %v597 = vpop.permute.xlu0 %596
  %v599 = vmul.f32 %v589, %v597
  %601 = vrot.lane.b32.xlu0 %v599, 64
  %v602 = vpop.permute.xlu0 %601
  %v604 = vadd.f32 %v593, %v602
  %s605 = smul.u32 4, 2
  %s606 = smul.addr %s605, 8
  %s607 = scalar_lea.vmem [#allocation3], %s606
  %v608 = vld [vmem:[%s607] sm:$0xff]
  %v609 = vld [vmem:[%s607 + $0x8] sm:$0xff]
  %v610 = vpack.c.bf16 %v604, %v604
  %v612 = vsel %vm245, %v610, 0
  %614 = vmatprep.subr.bf16.mxu0 %v308
  %615 = vmatpush1.bf16.msra.mxu0 %v307
  %616 = vmatprep.subr.bf16.mxu0 %v310
  %617 = vmatpush1.bf16.msra.mxu0 %v309
  %618 = vmatprep.subr.bf16.mxu0 %v312
  %619 = vmatpush1.bf16.msra.mxu0 %v311
  %620 = vmatprep.subr.bf16.mxu0 %v314
  %621 = vmatpush1.bf16.msra.mxu0 %v313
  %622 = vmatprep.subr.bf16.mxu0 0
  %623 = vmatpush1.bf16.msra.mxu0 0
  %624 = vmatprep.subr.bf16.mxu0 0
  %625 = vmatpush1.bf16.msra.mxu0 0
  %626 = vmatprep.subr.bf16.mxu0 0
  %627 = vmatpush1.bf16.msra.mxu0 0
  %628 = vmatprep.subr.bf16.mxu0 0
  %629 = vmatpush1.bf16.msra.mxu0 0
  %630 = vmatprep.subr.bf16.mxu0 0
  %631 = vmatpush1.bf16.msra.mxu0 0
  %632 = vmatprep.subr.bf16.mxu0 0
  %633 = vmatpush1.bf16.msra.mxu0 0
  %634 = vmatprep.subr.bf16.mxu0 0
  %635 = vmatpush1.bf16.msra.mxu0 0
  %636 = vmatprep.subr.bf16.mxu0 0
  %637 = vmatpush1.bf16.msra.mxu0 0
  %638 = vmatprep.subr.bf16.mxu0 0
  %639 = vmatpush1.bf16.msra.mxu0 0
  %640 = vmatprep.subr.bf16.mxu0 0
  %641 = vmatpush1.bf16.msra.mxu0 0
  %642 = vmatprep.subr.bf16.mxu0 0
  %643 = vmatpush1.bf16.msra.mxu0 0
  %644 = vmatprep.subr.bf16.mxu0 0
  %645 = vmatpush1.bf16.msra.mxu0 0
  %646 = vmatprep.mubr.bf16.mxu0 0
  %647 = vmatmul.mubr.bf16.gmra.mrb[0].mxu0 %v612
  %v648 = vpop.f32.mrb[0].mxu0
  %v649 = vadd.f32 0.0, %v648
  %v650 = vpop.f32.mrb[0].mxu0
  %v651 = vadd.f32 0.0, %v650
  %v652 = vpop.f32.mrb[0].mxu0
  %v653 = vpop.f32.mrb[0].mxu0
  %654 = vdwg.mxu0
  %v655 = vadd.f32 %v608, %v649
  %v656 = vxor.u32 %v655, 2147483648
  %v657 = vmul.f32 %v656, 1.442695
  %v658 = vpow.pop %v657
  %v659 = vadd.f32 %v658, 1.0
  %v660 = vrcp.pop %v659
  %v661 = vmul.f32 1.0, %v660
  %v662 = vadd.f32 %v651, %v274
  %v663 = vmul.f32 %v661, %v662
  %v664 = vadd.f32 %v609, %v663
  %v665 = vtanh.pop %v664
  %v666 = vsub.f32 %v604, %v665
  %668 = vrot.lane.b32.xlu0 %v666, 64
  %v669 = vpop.permute.xlu0 %668
  %v671 = vmul.f32 %v661, %v669
  %673 = vrot.lane.b32.xlu0 %v671, 64
  %v674 = vpop.permute.xlu0 %673
  %v676 = vadd.f32 %v665, %v674
  %s677 = smul.u32 5, 2
  %s678 = smul.addr %s677, 8
  %s679 = scalar_lea.vmem [#allocation3], %s678
  %v680 = vld [vmem:[%s679] sm:$0xff]
  %v681 = vld [vmem:[%s679 + $0x8] sm:$0xff]
  %v682 = vpack.c.bf16 %v676, %v676
  %v684 = vsel %vm245, %v682, 0
  %686 = vmatprep.subr.bf16.mxu0 %v308
  %687 = vmatpush1.bf16.msra.mxu0 %v307
  %688 = vmatprep.subr.bf16.mxu0 %v310
  %689 = vmatpush1.bf16.msra.mxu0 %v309
  %690 = vmatprep.subr.bf16.mxu0 %v312
  %691 = vmatpush1.bf16.msra.mxu0 %v311
  %692 = vmatprep.subr.bf16.mxu0 %v314
  %693 = vmatpush1.bf16.msra.mxu0 %v313
  %694 = vmatprep.subr.bf16.mxu0 0
  %695 = vmatpush1.bf16.msra.mxu0 0
  %696 = vmatprep.subr.bf16.mxu0 0
  %697 = vmatpush1.bf16.msra.mxu0 0
  %698 = vmatprep.subr.bf16.mxu0 0
  %699 = vmatpush1.bf16.msra.mxu0 0
  %700 = vmatprep.subr.bf16.mxu0 0
  %701 = vmatpush1.bf16.msra.mxu0 0
  %702 = vmatprep.subr.bf16.mxu0 0
  %703 = vmatpush1.bf16.msra.mxu0 0
  %704 = vmatprep.subr.bf16.mxu0 0
  %705 = vmatpush1.bf16.msra.mxu0 0
  %706 = vmatprep.subr.bf16.mxu0 0
  %707 = vmatpush1.bf16.msra.mxu0 0
  %708 = vmatprep.subr.bf16.mxu0 0
  %709 = vmatpush1.bf16.msra.mxu0 0
  %710 = vmatprep.subr.bf16.mxu0 0
  %711 = vmatpush1.bf16.msra.mxu0 0
  %712 = vmatprep.subr.bf16.mxu0 0
  %713 = vmatpush1.bf16.msra.mxu0 0
  %714 = vmatprep.subr.bf16.mxu0 0
  %715 = vmatpush1.bf16.msra.mxu0 0
  %716 = vmatprep.subr.bf16.mxu0 0
  %717 = vmatpush1.bf16.msra.mxu0 0
  %718 = vmatprep.mubr.bf16.mxu0 0
  %719 = vmatmul.mubr.bf16.gmra.mrb[0].mxu0 %v684
  %v720 = vpop.f32.mrb[0].mxu0
  %v721 = vadd.f32 0.0, %v720
  %v722 = vpop.f32.mrb[0].mxu0
  %v723 = vadd.f32 0.0, %v722
  %v724 = vpop.f32.mrb[0].mxu0
  %v725 = vpop.f32.mrb[0].mxu0
  %726 = vdwg.mxu0
  %v727 = vadd.f32 %v680, %v721
  %v728 = vxor.u32 %v727, 2147483648
  %v729 = vmul.f32 %v728, 1.442695
  %v730 = vpow.pop %v729
  %v731 = vadd.f32 %v730, 1.0
  %v732 = vrcp.pop %v731
  %v733 = vmul.f32 1.0, %v732
  %v734 = vadd.f32 %v723, %v274
  %v735 = vmul.f32 %v733, %v734
  %v736 = vadd.f32 %v681, %v735
  %v737 = vtanh.pop %v736
  %v738 = vsub.f32 %v676, %v737
  %740 = vrot.lane.b32.xlu0 %v738, 64
  %v741 = vpop.permute.xlu0 %740
  %v743 = vmul.f32 %v733, %v741
  %745 = vrot.lane.b32.xlu0 %v743, 64
  %v746 = vpop.permute.xlu0 %745
  %v748 = vadd.f32 %v737, %v746
  %s749 = smul.u32 6, 2
  %s750 = smul.addr %s749, 8
  %s751 = scalar_lea.vmem [#allocation3], %s750
  %v752 = vld [vmem:[%s751] sm:$0xff]
  %v753 = vld [vmem:[%s751 + $0x8] sm:$0xff]
  %v754 = vpack.c.bf16 %v748, %v748
  %v756 = vsel %vm245, %v754, 0
  %758 = vmatprep.subr.bf16.mxu0 %v308
  %759 = vmatpush1.bf16.msra.mxu0 %v307
  %760 = vmatprep.subr.bf16.mxu0 %v310
  %761 = vmatpush1.bf16.msra.mxu0 %v309
  %762 = vmatprep.subr.bf16.mxu0 %v312
  %763 = vmatpush1.bf16.msra.mxu0 %v311
  %764 = vmatprep.subr.bf16.mxu0 %v314
  %765 = vmatpush1.bf16.msra.mxu0 %v313
  %766 = vmatprep.subr.bf16.mxu0 0
  %767 = vmatpush1.bf16.msra.mxu0 0
  %768 = vmatprep.subr.bf16.mxu0 0
  %769 = vmatpush1.bf16.msra.mxu0 0
  %770 = vmatprep.subr.bf16.mxu0 0
  %771 = vmatpush1.bf16.msra.mxu0 0
  %772 = vmatprep.subr.bf16.mxu0 0
  %773 = vmatpush1.bf16.msra.mxu0 0
  %774 = vmatprep.subr.bf16.mxu0 0
  %775 = vmatpush1.bf16.msra.mxu0 0
  %776 = vmatprep.subr.bf16.mxu0 0
  %777 = vmatpush1.bf16.msra.mxu0 0
  %778 = vmatprep.subr.bf16.mxu0 0
  %779 = vmatpush1.bf16.msra.mxu0 0
  %780 = vmatprep.subr.bf16.mxu0 0
  %781 = vmatpush1.bf16.msra.mxu0 0
  %782 = vmatprep.subr.bf16.mxu0 0
  %783 = vmatpush1.bf16.msra.mxu0 0
  %784 = vmatprep.subr.bf16.mxu0 0
  %785 = vmatpush1.bf16.msra.mxu0 0
  %786 = vmatprep.subr.bf16.mxu0 0
  %787 = vmatpush1.bf16.msra.mxu0 0
  %788 = vmatprep.subr.bf16.mxu0 0
  %789 = vmatpush1.bf16.msra.mxu0 0
  %790 = vmatprep.mubr.bf16.mxu0 0
  %791 = vmatmul.mubr.bf16.gmra.mrb[0].mxu0 %v756
  %v792 = vpop.f32.mrb[0].mxu0
  %v793 = vadd.f32 0.0, %v792
  %v794 = vpop.f32.mrb[0].mxu0
  %v795 = vadd.f32 0.0, %v794
  %v796 = vpop.f32.mrb[0].mxu0
  %v797 = vpop.f32.mrb[0].mxu0
  %798 = vdwg.mxu0
  %v799 = vadd.f32 %v752, %v793
  %v800 = vxor.u32 %v799, 2147483648
  %v801 = vmul.f32 %v800, 1.442695
  %v802 = vpow.pop %v801
  %v803 = vadd.f32 %v802, 1.0
  %v804 = vrcp.pop %v803
  %v805 = vmul.f32 1.0, %v804
  %v806 = vadd.f32 %v795, %v274
  %v807 = vmul.f32 %v805, %v806
  %v808 = vadd.f32 %v753, %v807
  %v809 = vtanh.pop %v808
  %v810 = vsub.f32 %v748, %v809
  %812 = vrot.lane.b32.xlu0 %v810, 64
  %v813 = vpop.permute.xlu0 %812
  %v815 = vmul.f32 %v805, %v813
  %817 = vrot.lane.b32.xlu0 %v815, 64
  %v818 = vpop.permute.xlu0 %817
  %v820 = vadd.f32 %v809, %v818
  %s821 = smul.u32 7, 2
  %s822 = smul.addr %s821, 8
  %s823 = scalar_lea.vmem [#allocation3], %s822
  %v824 = vld [vmem:[%s823] sm:$0xff]
  %v825 = vld [vmem:[%s823 + $0x8] sm:$0xff]
  %v826 = vpack.c.bf16 %v820, %v820
  %v828 = vsel %vm245, %v826, 0
  %830 = vmatprep.subr.bf16.mxu0 %v308
  %831 = vmatpush1.bf16.msra.mxu0 %v307
  %832 = vmatprep.subr.bf16.mxu0 %v310
  %833 = vmatpush1.bf16.msra.mxu0 %v309
  %834 = vmatprep.subr.bf16.mxu0 %v312
  %835 = vmatpush1.bf16.msra.mxu0 %v311
  %836 = vmatprep.subr.bf16.mxu0 %v314
  %837 = vmatpush1.bf16.msra.mxu0 %v313
  %838 = vmatprep.subr.bf16.mxu0 0
  %839 = vmatpush1.bf16.msra.mxu0 0
  %840 = vmatprep.subr.bf16.mxu0 0
  %841 = vmatpush1.bf16.msra.mxu0 0
  %842 = vmatprep.subr.bf16.mxu0 0
  %843 = vmatpush1.bf16.msra.mxu0 0
  %844 = vmatprep.subr.bf16.mxu0 0
  %845 = vmatpush1.bf16.msra.mxu0 0
  %846 = vmatprep.subr.bf16.mxu0 0
  %847 = vmatpush1.bf16.msra.mxu0 0
  %848 = vmatprep.subr.bf16.mxu0 0
  %849 = vmatpush1.bf16.msra.mxu0 0
  %850 = vmatprep.subr.bf16.mxu0 0
  %851 = vmatpush1.bf16.msra.mxu0 0
  %852 = vmatprep.subr.bf16.mxu0 0
  %853 = vmatpush1.bf16.msra.mxu0 0
  %854 = vmatprep.subr.bf16.mxu0 0
  %855 = vmatpush1.bf16.msra.mxu0 0
  %856 = vmatprep.subr.bf16.mxu0 0
  %857 = vmatpush1.bf16.msra.mxu0 0
  %858 = vmatprep.subr.bf16.mxu0 0
  %859 = vmatpush1.bf16.msra.mxu0 0
  %860 = vmatprep.subr.bf16.mxu0 0
  %861 = vmatpush1.bf16.msra.mxu0 0
  %862 = vmatprep.mubr.bf16.mxu0 0
  %863 = vmatmul.mubr.bf16.gmra.mrb[0].mxu0 %v828
  %v864 = vpop.f32.mrb[0].mxu0
  %v865 = vadd.f32 0.0, %v864
  %v866 = vpop.f32.mrb[0].mxu0
  %v867 = vadd.f32 0.0, %v866
  %v868 = vpop.f32.mrb[0].mxu0
  %v869 = vpop.f32.mrb[0].mxu0
  %870 = vdwg.mxu0
  %v871 = vadd.f32 %v824, %v865
  %v872 = vxor.u32 %v871, 2147483648
  %v873 = vmul.f32 %v872, 1.442695
  %v874 = vpow.pop %v873
  %v875 = vadd.f32 %v874, 1.0
  %v876 = vrcp.pop %v875
  %v877 = vmul.f32 1.0, %v876
  %v878 = vadd.f32 %v867, %v274
  %v879 = vmul.f32 %v877, %v878
  %v880 = vadd.f32 %v825, %v879
  %v881 = vtanh.pop %v880
  %v882 = vsub.f32 %v820, %v881
  %884 = vrot.lane.b32.xlu0 %v882, 64
  %v885 = vpop.permute.xlu0 %884
  %v887 = vmul.f32 %v877, %v885
  %889 = vrot.lane.b32.xlu0 %v887, 64
  %v890 = vpop.permute.xlu0 %889
  %v892 = vadd.f32 %v881, %v890
  %893 = vst.msk [vmem:[#allocation2] sm:$0xff] %vm245, %v892
  // Predicated region
  $region34: #{net_forward.1} parent=0 // pred_check
    %p894 = pneg %p51
  $region35: #{net_forward.1} parent=0 // pred_check_branch
    %896 = sbr.rel (%p894) target = $region37
  $region36: #{net_forward.1} parent=0 // pred_region
    %v897 = vld [vmem:[#allocation2] sm:$0xff]
    %v898 = vld [vmem:[%s5] sm:$0x1]
    %v900 = vlaneseq
    %v901 = vshrl.u32 %v900, 7
    %v902 = vsub.s32 0, %v901
    %v903 = vrot.slane %v898, %v902
    %v905 = vmul.f32 %v897, %v903
    %v906 = vsel %vm245, %v905, 0.0
    %907 = vadd.xlane.f32.xlu0 %v906
    %v908 = vpop.xlane.xlu0 %907
    %v909 = vld [vmem:[#allocation4] sm:$0x1]
    %v911 = vlaneseq
    %v912 = vshrl.u32 %v911, 7
    %v913 = vsub.s32 0, %v912
    %v914 = vrot.slane %v909, %v913
    %v916 = vadd.f32 %v908, %v914
    %v917 = vxor.u32 %v916, 2147483648
    %v918 = vmul.f32 %v917, 1.442695
    %v919 = vpow.pop %v918
    %v920 = vadd.f32 %v919, 1.0
    %v921 = vrcp.pop %v920
    %v922 = vmul.f32 1.0, %v921
    %vm923 = vcmask 7168
    %924 = vst.msk [vmem:[%s7] sm:$0xff] %vm923, %v922
  $region37: #{net_forward.1} parent=0 // pred_fallthru
    _
  // Predicated region
  $region38: #{net_forward.1} parent=0 // pred_check
    _
  $region39: #{net_forward.1} parent=0 // pred_check_branch
    %926 = sbr.rel (0) target = $region41
  $region40: #{net_forward.1} parent=0 // pred_region
    _
  $region41: #{net_forward.1} parent=0 // pred_fallthru
    _
  // Predicated region
  $region42: #{net_forward.1} parent=0 // pred_check
    _
  $region43: #{net_forward.1} parent=0 // pred_check_branch
    %928 = sbr.rel (0) target = $region45
  $region44: #{net_forward.1} parent=0 // pred_region
    _
  $region45: #{net_forward.1} parent=0 // pred_fallthru
    _

</llo_original>
